<compile_context>
chip_gen: v6e
topology: v6e:2x2x1
jax: 0.10.0
libtpu: 0.0.40
codegen_flags: <defaults>
</compile_context>

<pallas_src>
import jax
import jax.numpy as jnp
from jax.experimental import pallas as pl
from jax.experimental.pallas import tpu as pltpu


def _gcn_spa_kernel(xf_ref, g_ref, ws_ref, w1s_ref, shift_ref, out_ref):
    # xf_ref   : (tb*Vp, Cin)   channels-last rows, flattened over (slab, joint)
    # g_ref    : (tb, Vp, Vp)   per-slab adjacency
    # ws_ref   : (Cin, Cout)    conv1x1 weight, BN scale folded in
    # w1s_ref  : (Cin, Cout)    conv1x1 weight, BN scale folded in
    # shift_ref: (1, Cout)      folded BN shift
    # out_ref  : (tb*Vp, Cout)
    tb, v, _ = g_ref.shape
    cin = xf_ref.shape[-1]

    xf = xf_ref[...].astype(jnp.float32)        # (tb*Vp, Cin)
    x3 = xf.reshape(tb, v, cin)                 # layout no-op: Vp % 8 == 0, lane dim unchanged
    g3 = g_ref[...].astype(jnp.float32)         # (tb, Vp, Vp)

    if cin <= 32:
        # Small-channel path: V broadcast-FMA steps on the VPU.  Avoids TB tiny
        # (V x V x Cin) matmul pushes per grid step (<=6.25% MXU utilisation on
        # v6e/v7x) and keeps the MXU free for the conv dots below.
        acc = g3[:, :, 0:1] * x3[:, 0:1, :]     # (tb,Vp,1)*(tb,1,Cin) -> (tb,Vp,Cin)
        for u in range(1, v):                   # static unroll, v is small
            acc = acc + g3[:, :, u:u + 1] * x3[:, u:u + 1, :]
    else:
        # Wide-channel path: batched matmul has a large enough K to feed the MXU.
        acc = jnp.einsum("bvu,buc->bvc", g3, x3, preferred_element_type=jnp.float32)

    gxf = acc.reshape(tb * v, cin)              # layout no-op (see above)

    # Two big-M conv1x1 dots (BN scale already folded into the weights).
    y = jnp.dot(gxf, ws_ref[...], preferred_element_type=jnp.float32)
    y = y + jnp.dot(xf, w1s_ref[...], preferred_element_type=jnp.float32)

    # fused BN shift + ReLU epilogue
    y = jnp.maximum(y + shift_ref[...], 0.0)
    out_ref[...] = y.astype(out_ref.dtype)


def _round_up(x, m):
    return -(-x // m) * m


def _padded_tile_bytes(rows, cols, itemsize=4):
    # VMEM footprint of one (rows, cols) f32 slab after (8, 128) native tiling.
    return _round_up(max(rows, 1), 8) * _round_up(max(cols, 1), 128) * itemsize


def _pick_tb(B, max_tb):
    # Prefer a divisor of B (no tail -> no jnp.pad HBM copy) and at least two
    # grid blocks so both v7x TensorCores get work under ("parallel",).
    cap = max(1, min(max_tb, -(-B // 2)))
    for tb in range(cap, max(1, cap // 2) - 1, -1):
        if B % tb == 0:
            return tb
    return cap          # no reasonable divisor: caller pads the tail instead


def gcn_spa_forward(x1, g, params, *, eps=1e-5):
    """x1: (N, Cin, V, T) NCHW as in PyTorch; g: (N, T, V, V). Returns (N, Cout, V, T)."""
    N, Cin, V, T = x1.shape
    Cout = params["w"].shape[0]
    B = N * T

    # ---- wrapper glue: NCHW -> channels-last slabs ---------------------------
    # TODO(synk): the NCHW<->NTVC permutes are extra HBM round trips on a
    # memory-bound op; fusing them into the kernel needs a 4-D in-kernel
    # relayout with no clean Mosaic lowering at these V/C sizes.
    xp = jnp.transpose(x1, (0, 3, 2, 1)).reshape(B, V, Cin)     # (B, V, Cin)
    gb = g.reshape(B, V, V)                                      # (B, V, V)

    # Pad the joint axis to a sublane multiple so the in-kernel
    # (tb*V, C) <-> (tb, V, C) reshapes are layout no-ops.  Zero rows/cols are
    # exact for the math and sliced off below (handles e.g. V=25).
    Vp = _round_up(V, 8)
    if Vp != V:
        xp = jnp.pad(xp, ((0, 0), (0, Vp - V), (0, 0)))
        gb = jnp.pad(gb, ((0, 0), (0, Vp - V), (0, Vp - V)))

    # ---- fold BatchNorm2d (eval mode) into the conv weights ------------------
    scale = params["bn_gamma"] / jnp.sqrt(params["bn_var"] + eps)           # (Cout,)
    shift = (params["bn_beta"] - params["bn_mean"] * scale).reshape(1, Cout)
    ws = (params["w"].T * scale).astype(jnp.float32)                        # (Cin, Cout)
    w1s = (params["w1"].T * scale).astype(jnp.float32)                      # (Cin, Cout)
    # TODO(synk): casting xp/gb/ws/w1s to bf16 would halve HBM traffic and VMEM
    # (f32 accumulation kept); left in f32 here to preserve module numerics.

    # ---- tile sizing from the chip's VMEM capacity ---------------------------
    vmem_cap = 64 * 1024 * 1024
    try:
        vmem_cap = int(getattr(pltpu.get_tpu_info(), "vmem_capacity_bytes", vmem_cap))
    except Exception:
        pass
    per_slab = (2 * _padded_tile_bytes(Vp, Cin)      # x block   (double-buffered)
                + 2 * _padded_tile_bytes(Vp, Vp)     # g block   (double-buffered)
                + 2 * _padded_tile_bytes(Vp, Cout)   # out block (double-buffered)
                + _padded_tile_bytes(Vp, Cin)        # aggregation intermediate
                + 2 * _padded_tile_bytes(Vp, Cout))  # f32 conv intermediates
    tile_budget = min(int(0.35 * vmem_cap), 80 * 1024 * 1024)   # ~22 MiB v7x, ~45 MiB v5e/v6e
    max_tb = max(8, min(1024, tile_budget // max(per_slab, 1)))
    vmem_limit = int(min(0.75 * vmem_cap, 100 * 1024 * 1024))

    tb = _pick_tb(B, max_tb)
    nb = -(-B // tb)
    Bp = nb * tb
    if Bp != B:                      # fallback only when B has no usable divisor
        xp = jnp.pad(xp, ((0, Bp - B), (0, 0), (0, 0)))
        gb = jnp.pad(gb, ((0, Bp - B), (0, 0), (0, 0)))

    xp2 = xp.reshape(Bp * Vp, Cin)   # contiguous reshape, no extra HBM copy

    flops = Bp * Vp * 2 * Vp * Cin + 2 * (Bp * Vp * 2 * Cin * Cout)
    bytes_accessed = 4 * (Bp * Vp * Cin + Bp * Vp * Vp + Bp * Vp * Cout
                          + 2 * Cin * Cout + Cout)

    out2d = pl.pallas_call(
        _gcn_spa_kernel,
        out_shape=jax.ShapeDtypeStruct((Bp * Vp, Cout), x1.dtype),
        grid_spec=pltpu.PrefetchScalarGridSpec(
            num_scalar_prefetch=0,
            grid=(nb,),
            in_specs=[
                pl.BlockSpec((tb * Vp, Cin), lambda b: (b, 0)),
                pl.BlockSpec((tb, Vp, Vp), lambda b: (b, 0, 0)),
                pl.BlockSpec((Cin, Cout), lambda b: (0, 0)),
                pl.BlockSpec((Cin, Cout), lambda b: (0, 0)),
                pl.BlockSpec((1, Cout), lambda b: (0, 0)),
            ],
            # TODO(synk): a fully lane-dense (tb, V*Cout)/(tb, V*V) packing for
            # the output and g needs a lane-dim-changing in-kernel reshape
            # (relayout) whose Mosaic lowering is not guaranteed at these
            # shapes; kept the guaranteed-lowerable channels-last row layout.
            out_specs=pl.BlockSpec((tb * Vp, Cout), lambda b: (b, 0)),
        ),
        compiler_params=pltpu.CompilerParams(
            dimension_semantics=("parallel",),
            vmem_limit_bytes=vmem_limit,
        ),
        cost_estimate=pl.CostEstimate(
            flops=int(flops), transcendentals=0, bytes_accessed=int(bytes_accessed)),
    )(xp2, gb, ws, w1s, shift)

    out = out2d.reshape(Bp, Vp, Cout)[:B, :V].reshape(N, T, V, Cout)
    return jnp.transpose(out, (0, 3, 2, 1))          # back to NCHW


def gcn_spa_reference(x1, g, params, *, eps=1e-5):
    """Pure-JAX transcription of the PyTorch forward, for verification."""
    x = jnp.transpose(x1, (0, 3, 2, 1))                  # (N, T, V, Cin)
    x = jnp.einsum("ntvu,ntuc->ntvc", g, x)              # g.matmul(x)
    x = jnp.transpose(x, (0, 3, 2, 1))                   # (N, Cin, V, T)
    y = jnp.einsum("oc,ncvt->novt", params["w"], x) \
        + jnp.einsum("oc,ncvt->novt", params["w1"], x1)
    gam = params["bn_gamma"][None, :, None, None]
    bet = params["bn_beta"][None, :, None, None]
    mu = params["bn_mean"][None, :, None, None]
    var = params["bn_var"][None, :, None, None]
    y = gam * (y - mu) / jnp.sqrt(var + eps) + bet
    return jnp.maximum(y, 0.0)


if __name__ == "__main__":
    key = jax.random.PRNGKey(0)
    N, Cin, Cout, V, T = 2, 4, 8, 16, 8   # batch, in_feature, out_feature, joints, frames
    k = jax.random.split(key, 8)

    x1 = jax.random.normal(k[0], (N, Cin, V, T), jnp.float32)
    g = jax.nn.softmax(jax.random.normal(k[1], (N, T, V, V), jnp.float32), axis=-1)

    params = {
        "w":  jax.random.normal(k[2], (Cout, Cin), jnp.float32) * 0.1,
        "w1": jax.random.normal(k[3], (Cout, Cin), jnp.float32) * 0.1,
        "bn_gamma": 1.0 + 0.1 * jax.random.normal(k[4], (Cout,), jnp.float32),
        "bn_beta":  0.1 * jax.random.normal(k[5], (Cout,), jnp.float32),
        "bn_mean":  0.1 * jax.random.normal(k[6], (Cout,), jnp.float32),
        "bn_var":   1.0 + 0.1 * jnp.abs(jax.random.normal(k[7], (Cout,), jnp.float32)),
    }

    out = gcn_spa_forward(x1, g, params)
    jax.block_until_ready(out)

    ref = gcn_spa_reference(x1, g, params)
    assert out.shape == (N, Cout, V, T), out.shape
    assert jnp.allclose(out, ref, atol=5e-4, rtol=5e-4), "mismatch vs JAX reference"
    print("KERNEL_OK")
</pallas_src>

<mosaic_0001>
module attributes {stable_mosaic.version = 11 : i64} {
  func.func @_gcn_spa_kernel(%arg0: i32, %arg1: memref<128x4xf32, #tpu.memory_space<vmem>>, %arg2: memref<8x16x16xf32, #tpu.memory_space<vmem>>, %arg3: memref<4x8xf32, #tpu.memory_space<vmem>>, %arg4: memref<4x8xf32, #tpu.memory_space<vmem>>, %arg5: memref<1x8xf32, #tpu.memory_space<vmem>>, %arg6: memref<128x8xf32, #tpu.memory_space<vmem>>) attributes {dimension_semantics = [#tpu.dimension_semantics<parallel>], iteration_bounds = array<i64: 2>, scalar_prefetch = 0 : i64, scratch_operands = 0 : i64, tpu.core_type = #tpu.core_type<tc>, window_params = [{transform_indices = @transform_0, window_bounds = array<i64: 128, 4>}, {transform_indices = @transform_1, window_bounds = array<i64: 8, 16, 16>}, {pipeline_mode = #tpu.pipeline_mode<synchronous>, transform_indices = @transform_2, window_bounds = array<i64: 4, 8>}, {pipeline_mode = #tpu.pipeline_mode<synchronous>, transform_indices = @transform_3, window_bounds = array<i64: 4, 8>}, {pipeline_mode = #tpu.pipeline_mode<synchronous>, transform_indices = @transform_4, window_bounds = array<i64: 1, 8>}, {transform_indices = @transform_5, window_bounds = array<i64: 128, 8>}]} {
    %c0 = arith.constant 0 : index
    %c0_0 = arith.constant 0 : index
    %0 = vector.load %arg1[%c0, %c0_0] : memref<128x4xf32, #tpu.memory_space<vmem>>, vector<128x4xf32>
    %1 = vector.shape_cast %0 : vector<128x4xf32> to vector<8x16x4xf32>
    %c0_1 = arith.constant 0 : index
    %c0_2 = arith.constant 0 : index
    %c0_3 = arith.constant 0 : index
    %2 = vector.load %arg2[%c0_1, %c0_2, %c0_3] : memref<8x16x16xf32, #tpu.memory_space<vmem>>, vector<8x16x16xf32>
    %3 = vector.extract_strided_slice %2 {offsets = [0, 0, 0], sizes = [8, 16, 1], strides = [1, 1, 1]} : vector<8x16x16xf32> to vector<8x16x1xf32>
    %4 = vector.extract_strided_slice %1 {offsets = [0, 0, 0], sizes = [8, 1, 4], strides = [1, 1, 1]} : vector<8x16x4xf32> to vector<8x1x4xf32>
    %5 = vector.broadcast %3 : vector<8x16x1xf32> to vector<8x16x4xf32>
    %6 = vector.broadcast %4 : vector<8x1x4xf32> to vector<8x16x4xf32>
    %7 = arith.mulf %5, %6 : vector<8x16x4xf32>
    %8 = vector.extract_strided_slice %2 {offsets = [0, 0, 1], sizes = [8, 16, 1], strides = [1, 1, 1]} : vector<8x16x16xf32> to vector<8x16x1xf32>
    %9 = vector.extract_strided_slice %1 {offsets = [0, 1, 0], sizes = [8, 1, 4], strides = [1, 1, 1]} : vector<8x16x4xf32> to vector<8x1x4xf32>
    %10 = vector.broadcast %8 : vector<8x16x1xf32> to vector<8x16x4xf32>
    %11 = vector.broadcast %9 : vector<8x1x4xf32> to vector<8x16x4xf32>
    %12 = arith.mulf %10, %11 : vector<8x16x4xf32>
    %13 = arith.addf %7, %12 : vector<8x16x4xf32>
    %14 = vector.extract_strided_slice %2 {offsets = [0, 0, 2], sizes = [8, 16, 1], strides = [1, 1, 1]} : vector<8x16x16xf32> to vector<8x16x1xf32>
    %15 = vector.extract_strided_slice %1 {offsets = [0, 2, 0], sizes = [8, 1, 4], strides = [1, 1, 1]} : vector<8x16x4xf32> to vector<8x1x4xf32>
    %16 = vector.broadcast %14 : vector<8x16x1xf32> to vector<8x16x4xf32>
    %17 = vector.broadcast %15 : vector<8x1x4xf32> to vector<8x16x4xf32>
    %18 = arith.mulf %16, %17 : vector<8x16x4xf32>
    %19 = arith.addf %13, %18 : vector<8x16x4xf32>
    %20 = vector.extract_strided_slice %2 {offsets = [0, 0, 3], sizes = [8, 16, 1], strides = [1, 1, 1]} : vector<8x16x16xf32> to vector<8x16x1xf32>
    %21 = vector.extract_strided_slice %1 {offsets = [0, 3, 0], sizes = [8, 1, 4], strides = [1, 1, 1]} : vector<8x16x4xf32> to vector<8x1x4xf32>
    %22 = vector.broadcast %20 : vector<8x16x1xf32> to vector<8x16x4xf32>
    %23 = vector.broadcast %21 : vector<8x1x4xf32> to vector<8x16x4xf32>
    %24 = arith.mulf %22, %23 : vector<8x16x4xf32>
    %25 = arith.addf %19, %24 : vector<8x16x4xf32>
    %26 = vector.extract_strided_slice %2 {offsets = [0, 0, 4], sizes = [8, 16, 1], strides = [1, 1, 1]} : vector<8x16x16xf32> to vector<8x16x1xf32>
    %27 = vector.extract_strided_slice %1 {offsets = [0, 4, 0], sizes = [8, 1, 4], strides = [1, 1, 1]} : vector<8x16x4xf32> to vector<8x1x4xf32>
    %28 = vector.broadcast %26 : vector<8x16x1xf32> to vector<8x16x4xf32>
    %29 = vector.broadcast %27 : vector<8x1x4xf32> to vector<8x16x4xf32>
    %30 = arith.mulf %28, %29 : vector<8x16x4xf32>
    %31 = arith.addf %25, %30 : vector<8x16x4xf32>
    %32 = vector.extract_strided_slice %2 {offsets = [0, 0, 5], sizes = [8, 16, 1], strides = [1, 1, 1]} : vector<8x16x16xf32> to vector<8x16x1xf32>
    %33 = vector.extract_strided_slice %1 {offsets = [0, 5, 0], sizes = [8, 1, 4], strides = [1, 1, 1]} : vector<8x16x4xf32> to vector<8x1x4xf32>
    %34 = vector.broadcast %32 : vector<8x16x1xf32> to vector<8x16x4xf32>
    %35 = vector.broadcast %33 : vector<8x1x4xf32> to vector<8x16x4xf32>
    %36 = arith.mulf %34, %35 : vector<8x16x4xf32>
    %37 = arith.addf %31, %36 : vector<8x16x4xf32>
    %38 = vector.extract_strided_slice %2 {offsets = [0, 0, 6], sizes = [8, 16, 1], strides = [1, 1, 1]} : vector<8x16x16xf32> to vector<8x16x1xf32>
    %39 = vector.extract_strided_slice %1 {offsets = [0, 6, 0], sizes = [8, 1, 4], strides = [1, 1, 1]} : vector<8x16x4xf32> to vector<8x1x4xf32>
    %40 = vector.broadcast %38 : vector<8x16x1xf32> to vector<8x16x4xf32>
    %41 = vector.broadcast %39 : vector<8x1x4xf32> to vector<8x16x4xf32>
    %42 = arith.mulf %40, %41 : vector<8x16x4xf32>
    %43 = arith.addf %37, %42 : vector<8x16x4xf32>
    %44 = vector.extract_strided_slice %2 {offsets = [0, 0, 7], sizes = [8, 16, 1], strides = [1, 1, 1]} : vector<8x16x16xf32> to vector<8x16x1xf32>
    %45 = vector.extract_strided_slice %1 {offsets = [0, 7, 0], sizes = [8, 1, 4], strides = [1, 1, 1]} : vector<8x16x4xf32> to vector<8x1x4xf32>
    %46 = vector.broadcast %44 : vector<8x16x1xf32> to vector<8x16x4xf32>
    %47 = vector.broadcast %45 : vector<8x1x4xf32> to vector<8x16x4xf32>
    %48 = arith.mulf %46, %47 : vector<8x16x4xf32>
    %49 = arith.addf %43, %48 : vector<8x16x4xf32>
    %50 = vector.extract_strided_slice %2 {offsets = [0, 0, 8], sizes = [8, 16, 1], strides = [1, 1, 1]} : vector<8x16x16xf32> to vector<8x16x1xf32>
    %51 = vector.extract_strided_slice %1 {offsets = [0, 8, 0], sizes = [8, 1, 4], strides = [1, 1, 1]} : vector<8x16x4xf32> to vector<8x1x4xf32>
    %52 = vector.broadcast %50 : vector<8x16x1xf32> to vector<8x16x4xf32>
    %53 = vector.broadcast %51 : vector<8x1x4xf32> to vector<8x16x4xf32>
    %54 = arith.mulf %52, %53 : vector<8x16x4xf32>
    %55 = arith.addf %49, %54 : vector<8x16x4xf32>
    %56 = vector.extract_strided_slice %2 {offsets = [0, 0, 9], sizes = [8, 16, 1], strides = [1, 1, 1]} : vector<8x16x16xf32> to vector<8x16x1xf32>
    %57 = vector.extract_strided_slice %1 {offsets = [0, 9, 0], sizes = [8, 1, 4], strides = [1, 1, 1]} : vector<8x16x4xf32> to vector<8x1x4xf32>
    %58 = vector.broadcast %56 : vector<8x16x1xf32> to vector<8x16x4xf32>
    %59 = vector.broadcast %57 : vector<8x1x4xf32> to vector<8x16x4xf32>
    %60 = arith.mulf %58, %59 : vector<8x16x4xf32>
    %61 = arith.addf %55, %60 : vector<8x16x4xf32>
    %62 = vector.extract_strided_slice %2 {offsets = [0, 0, 10], sizes = [8, 16, 1], strides = [1, 1, 1]} : vector<8x16x16xf32> to vector<8x16x1xf32>
    %63 = vector.extract_strided_slice %1 {offsets = [0, 10, 0], sizes = [8, 1, 4], strides = [1, 1, 1]} : vector<8x16x4xf32> to vector<8x1x4xf32>
    %64 = vector.broadcast %62 : vector<8x16x1xf32> to vector<8x16x4xf32>
    %65 = vector.broadcast %63 : vector<8x1x4xf32> to vector<8x16x4xf32>
    %66 = arith.mulf %64, %65 : vector<8x16x4xf32>
    %67 = arith.addf %61, %66 : vector<8x16x4xf32>
    %68 = vector.extract_strided_slice %2 {offsets = [0, 0, 11], sizes = [8, 16, 1], strides = [1, 1, 1]} : vector<8x16x16xf32> to vector<8x16x1xf32>
    %69 = vector.extract_strided_slice %1 {offsets = [0, 11, 0], sizes = [8, 1, 4], strides = [1, 1, 1]} : vector<8x16x4xf32> to vector<8x1x4xf32>
    %70 = vector.broadcast %68 : vector<8x16x1xf32> to vector<8x16x4xf32>
    %71 = vector.broadcast %69 : vector<8x1x4xf32> to vector<8x16x4xf32>
    %72 = arith.mulf %70, %71 : vector<8x16x4xf32>
    %73 = arith.addf %67, %72 : vector<8x16x4xf32>
    %74 = vector.extract_strided_slice %2 {offsets = [0, 0, 12], sizes = [8, 16, 1], strides = [1, 1, 1]} : vector<8x16x16xf32> to vector<8x16x1xf32>
    %75 = vector.extract_strided_slice %1 {offsets = [0, 12, 0], sizes = [8, 1, 4], strides = [1, 1, 1]} : vector<8x16x4xf32> to vector<8x1x4xf32>
    %76 = vector.broadcast %74 : vector<8x16x1xf32> to vector<8x16x4xf32>
    %77 = vector.broadcast %75 : vector<8x1x4xf32> to vector<8x16x4xf32>
    %78 = arith.mulf %76, %77 : vector<8x16x4xf32>
    %79 = arith.addf %73, %78 : vector<8x16x4xf32>
    %80 = vector.extract_strided_slice %2 {offsets = [0, 0, 13], sizes = [8, 16, 1], strides = [1, 1, 1]} : vector<8x16x16xf32> to vector<8x16x1xf32>
    %81 = vector.extract_strided_slice %1 {offsets = [0, 13, 0], sizes = [8, 1, 4], strides = [1, 1, 1]} : vector<8x16x4xf32> to vector<8x1x4xf32>
    %82 = vector.broadcast %80 : vector<8x16x1xf32> to vector<8x16x4xf32>
    %83 = vector.broadcast %81 : vector<8x1x4xf32> to vector<8x16x4xf32>
    %84 = arith.mulf %82, %83 : vector<8x16x4xf32>
    %85 = arith.addf %79, %84 : vector<8x16x4xf32>
    %86 = vector.extract_strided_slice %2 {offsets = [0, 0, 14], sizes = [8, 16, 1], strides = [1, 1, 1]} : vector<8x16x16xf32> to vector<8x16x1xf32>
    %87 = vector.extract_strided_slice %1 {offsets = [0, 14, 0], sizes = [8, 1, 4], strides = [1, 1, 1]} : vector<8x16x4xf32> to vector<8x1x4xf32>
    %88 = vector.broadcast %86 : vector<8x16x1xf32> to vector<8x16x4xf32>
    %89 = vector.broadcast %87 : vector<8x1x4xf32> to vector<8x16x4xf32>
    %90 = arith.mulf %88, %89 : vector<8x16x4xf32>
    %91 = arith.addf %85, %90 : vector<8x16x4xf32>
    %92 = vector.extract_strided_slice %2 {offsets = [0, 0, 15], sizes = [8, 16, 1], strides = [1, 1, 1]} : vector<8x16x16xf32> to vector<8x16x1xf32>
    %93 = vector.extract_strided_slice %1 {offsets = [0, 15, 0], sizes = [8, 1, 4], strides = [1, 1, 1]} : vector<8x16x4xf32> to vector<8x1x4xf32>
    %94 = vector.broadcast %92 : vector<8x16x1xf32> to vector<8x16x4xf32>
    %95 = vector.broadcast %93 : vector<8x1x4xf32> to vector<8x16x4xf32>
    %96 = arith.mulf %94, %95 : vector<8x16x4xf32>
    %97 = arith.addf %91, %96 : vector<8x16x4xf32>
    %98 = vector.shape_cast %97 : vector<8x16x4xf32> to vector<128x4xf32>
    %c0_4 = arith.constant 0 : index
    %c0_5 = arith.constant 0 : index
    %99 = vector.load %arg3[%c0_4, %c0_5] : memref<4x8xf32, #tpu.memory_space<vmem>>, vector<4x8xf32>
    %cst = arith.constant dense<0.000000e+00> : vector<128x8xf32>
    %100 = tpu.matmul %98, %99, %cst {dimension_numbers = #tpu.dot_dimension_numbers<[1], [0], [0], [1], [0, 0, 1, 1], [], []>} : vector<128x4xf32>, vector<4x8xf32>, vector<128x8xf32> -> vector<128x8xf32>
    %c0_6 = arith.constant 0 : index
    %c0_7 = arith.constant 0 : index
    %101 = vector.load %arg4[%c0_6, %c0_7] : memref<4x8xf32, #tpu.memory_space<vmem>>, vector<4x8xf32>
    %cst_8 = arith.constant dense<0.000000e+00> : vector<128x8xf32>
    %102 = tpu.matmul %0, %101, %cst_8 {dimension_numbers = #tpu.dot_dimension_numbers<[1], [0], [0], [1], [0, 0, 1, 1], [], []>} : vector<128x4xf32>, vector<4x8xf32>, vector<128x8xf32> -> vector<128x8xf32>
    %103 = arith.addf %100, %102 : vector<128x8xf32>
    %c0_9 = arith.constant 0 : index
    %c0_10 = arith.constant 0 : index
    %104 = vector.load %arg5[%c0_9, %c0_10] : memref<1x8xf32, #tpu.memory_space<vmem>>, vector<1x8xf32>
    %105 = vector.broadcast %104 : vector<1x8xf32> to vector<128x8xf32>
    %106 = arith.addf %103, %105 : vector<128x8xf32>
    %cst_11 = arith.constant 0.000000e+00 : f32
    %107 = vector.broadcast %cst_11 : f32 to vector<128x8xf32>
    %108 = arith.maximumf %106, %107 : vector<128x8xf32>
    %c0_12 = arith.constant 0 : index
    %c0_13 = arith.constant 0 : index
    %109 = vector.load %arg6[%c0_12, %c0_13] : memref<128x8xf32, #tpu.memory_space<vmem>>, vector<128x8xf32>
    tpu.vector_store %arg6[%c0_12, %c0_13], %108 {strides = array<i32>} : memref<128x8xf32, #tpu.memory_space<vmem>>, vector<128x8xf32>,
    return
  }
  func.func @transform_0(%arg0: i32) -> (i32, i32) {
    %c0_i32 = arith.constant 0 : i32
    %c0_i32_0 = arith.constant 0 : i32
    return %arg0, %c0_i32 : i32, i32
  }
  func.func @transform_1(%arg0: i32) -> (i32, i32, i32) {
    %c0_i32 = arith.constant 0 : i32
    %c0_i32_0 = arith.constant 0 : i32
    %c0_i32_1 = arith.constant 0 : i32
    return %arg0, %c0_i32, %c0_i32_0 : i32, i32, i32
  }
  func.func @transform_2(%arg0: i32) -> (i32, i32) {
    %c0_i32 = arith.constant 0 : i32
    %c0_i32_0 = arith.constant 0 : i32
    %c0_i32_1 = arith.constant 0 : i32
    return %c0_i32, %c0_i32_0 : i32, i32
  }
  func.func @transform_3(%arg0: i32) -> (i32, i32) {
    %c0_i32 = arith.constant 0 : i32
    %c0_i32_0 = arith.constant 0 : i32
    %c0_i32_1 = arith.constant 0 : i32
    return %c0_i32, %c0_i32_0 : i32, i32
  }
  func.func @transform_4(%arg0: i32) -> (i32, i32) {
    %c0_i32 = arith.constant 0 : i32
    %c0_i32_0 = arith.constant 0 : i32
    %c0_i32_1 = arith.constant 0 : i32
    return %c0_i32, %c0_i32_0 : i32, i32
  }
  func.func @transform_5(%arg0: i32) -> (i32, i32) {
    %c0_i32 = arith.constant 0 : i32
    %c0_i32_0 = arith.constant 0 : i32
    return %arg0, %c0_i32 : i32, i32
  }
}

</mosaic_0001>

<llo_original>
// kernel: tpu_custom_call.1
$region0: #{tpu_custom_call.1}
  #allocation0 [shape = 'u32[]', space=smem, size = 0x4, offset = 0x4, fixed_abs, tag = 'smem constant byte address 0x4 - core index']
  #allocation1 [shape = 'u32[144,128]{1,0:T(1,128)}', space=vmem, size = 0x12000, scoped, tag = 'internal scratch']
  %s0 = inlined_call_operand.vmem [shape: f32[256,4], index: 0, kind: input, shape index: {}]
  %s1 = inlined_call_operand.vmem [shape: f32[16,16,16], index: 1, kind: input, shape index: {}]
  %s2 = inlined_call_operand.vmem [shape: f32[4,8], index: 2, kind: input, shape index: {}]
  %s3 = inlined_call_operand.vmem [shape: f32[4,8], index: 3, kind: input, shape index: {}]
  %s4 = inlined_call_operand.vmem [shape: f32[1,8], index: 4, kind: input, shape index: {}]
  %s5 = inlined_call_operand.vmem [shape: f32[256,8], index: 5, kind: output, shape index: {}]
  %s6 = sld [smem:[#allocation0]]
  $region53: #{tpu_custom_call.1} parent=0
    _
  %s8 = ssub.s32 1, %s6
  %s9 = scalar_select 0, %s8, %s6
  loop: start=0, step=1, limit=4
  $region2: #{tpu_custom_call.1} parent=0 // loop_pre_header
    _
  $region3: #{tpu_custom_call.1} parent=0 // loop_header
    %s11 = sphi 0, %s15
    %p12 = scmp.ge.s32.totalorder %s11, 4
    %s21 = sphi 0, %s23
    %s24 = sphi 0, %s21
    %s25 = sphi 0, %s24
    %s41 = sphi 0, %s25
    %s47 = sphi 0, %s49
    %s50 = sphi 0, %s47
    %s51 = sphi 0, %s50
    %s67 = sphi 0, %s51
    %s71 = sphi 0, %s71
    %s73 = sphi 0, %s71
    %s74 = sphi 0, %s73
    %s88 = sphi 0, %s74
    %s92 = sphi 0, %s92
    %s94 = sphi 0, %s92
    %s95 = sphi 0, %s94
    %s109 = sphi 0, %s95
    %s113 = sphi 0, %s113
    %s115 = sphi 0, %s113
    %s116 = sphi 0, %s115
    %s130 = sphi 0, %s116
    %s136 = sphi 0, %s138
    %s139 = sphi 0, %s136
    %s140 = sphi 0, %s139
    %s156 = sphi 0, %s140
  $region4: #{tpu_custom_call.1} parent=0 // loop_header_branch
    %14 = sbr.rel (%p12) target = $region8
  $region5: #{tpu_custom_call.1} parent=0 // loop_body
    %s16 = ssub.s32 %s11, 1
    %s17 = ssub.s32 %s11, 2
    %s18 = sadd.s32 %s11, 1
    %s19 = ssub.s32 %s11, %s18
    %p20 = scmp.eq.s32.totalorder %s19, 0
    %s22 = sadd.s32 %s21, 1
    %s23 = scalar_select %p20, %s21, %s22
    %p26 = pneg %p20
    %p27 = scmp.eq.s32.totalorder %s11, 1
    %p28 = por %p26, %p27
    %p29 = scmp.ne.s32.totalorder %s21, %s24
    %p30 = scmp.eq.s32.totalorder %s11, 0
    %p31 = por %p29, %p30
    %p32 = scmp.ne.s32.totalorder %s21, %s24
    %p33 = scmp.eq.s32.totalorder %s16, 1
    %p34 = por %p32, %p33
    %p35 = scmp.ne.s32.totalorder %s24, %s25
    %p36 = scmp.eq.s32.totalorder %s16, 0
    %p37 = por %p35, %p36
    %p38 = scmp.ne.s32.totalorder %s24, %s25
    %p39 = scmp.eq.s32.totalorder %s17, 1
    %p40 = por %p38, %p39
    %p42 = scmp.ne.s32.totalorder %s25, %s41
    %p43 = scmp.eq.s32.totalorder %s17, 0
    %p44 = por %p42, %p43
    %s45 = ssub.s32 %s11, %s18
    %p46 = scmp.eq.s32.totalorder %s45, 0
    %s48 = sadd.s32 %s47, 1
    %s49 = scalar_select %p46, %s47, %s48
    %p52 = pneg %p46
    %p53 = scmp.eq.s32.totalorder %s11, 1
    %p54 = por %p52, %p53
    %p55 = scmp.ne.s32.totalorder %s47, %s50
    %p56 = scmp.eq.s32.totalorder %s11, 0
    %p57 = por %p55, %p56
    %p58 = scmp.ne.s32.totalorder %s47, %s50
    %p59 = scmp.eq.s32.totalorder %s16, 1
    %p60 = por %p58, %p59
    %p61 = scmp.ne.s32.totalorder %s50, %s51
    %p62 = scmp.eq.s32.totalorder %s16, 0
    %p63 = por %p61, %p62
    %p64 = scmp.ne.s32.totalorder %s50, %s51
    %p65 = scmp.eq.s32.totalorder %s17, 1
    %p66 = por %p64, %p65
    %p68 = scmp.ne.s32.totalorder %s51, %s67
    %p69 = scmp.eq.s32.totalorder %s17, 0
    %p70 = por %p68, %p69
    %s72 = sadd.s32 %s71, 1
    %p75 = scmp.eq.s32.totalorder %s11, 1
    %p76 = scmp.ne.s32.totalorder %s71, %s73
    %p77 = scmp.eq.s32.totalorder %s11, 0
    %p78 = por %p76, %p77
    %p79 = scmp.ne.s32.totalorder %s71, %s73
    %p80 = scmp.eq.s32.totalorder %s16, 1
    %p81 = por %p79, %p80
    %p82 = scmp.ne.s32.totalorder %s73, %s74
    %p83 = scmp.eq.s32.totalorder %s16, 0
    %p84 = por %p82, %p83
    %p85 = scmp.ne.s32.totalorder %s73, %s74
    %p86 = scmp.eq.s32.totalorder %s17, 1
    %p87 = por %p85, %p86
    %p89 = scmp.ne.s32.totalorder %s74, %s88
    %p90 = scmp.eq.s32.totalorder %s17, 0
    %p91 = por %p89, %p90
    %s93 = sadd.s32 %s92, 1
    %p96 = scmp.eq.s32.totalorder %s11, 1
    %p97 = scmp.ne.s32.totalorder %s92, %s94
    %p98 = scmp.eq.s32.totalorder %s11, 0
    %p99 = por %p97, %p98
    %p100 = scmp.ne.s32.totalorder %s92, %s94
    %p101 = scmp.eq.s32.totalorder %s16, 1
    %p102 = por %p100, %p101
    %p103 = scmp.ne.s32.totalorder %s94, %s95
    %p104 = scmp.eq.s32.totalorder %s16, 0
    %p105 = por %p103, %p104
    %p106 = scmp.ne.s32.totalorder %s94, %s95
    %p107 = scmp.eq.s32.totalorder %s17, 1
    %p108 = por %p106, %p107
    %p110 = scmp.ne.s32.totalorder %s95, %s109
    %p111 = scmp.eq.s32.totalorder %s17, 0
    %p112 = por %p110, %p111
    %s114 = sadd.s32 %s113, 1
    %p117 = scmp.eq.s32.totalorder %s11, 1
    %p118 = scmp.ne.s32.totalorder %s113, %s115
    %p119 = scmp.eq.s32.totalorder %s11, 0
    %p120 = por %p118, %p119
    %p121 = scmp.ne.s32.totalorder %s113, %s115
    %p122 = scmp.eq.s32.totalorder %s16, 1
    %p123 = por %p121, %p122
    %p124 = scmp.ne.s32.totalorder %s115, %s116
    %p125 = scmp.eq.s32.totalorder %s16, 0
    %p126 = por %p124, %p125
    %p127 = scmp.ne.s32.totalorder %s115, %s116
    %p128 = scmp.eq.s32.totalorder %s17, 1
    %p129 = por %p127, %p128
    %p131 = scmp.ne.s32.totalorder %s116, %s130
    %p132 = scmp.eq.s32.totalorder %s17, 0
    %p133 = por %p131, %p132
    %s134 = ssub.s32 %s11, %s18
    %p135 = scmp.eq.s32.totalorder %s134, 0
    %s137 = sadd.s32 %s136, 1
    %s138 = scalar_select %p135, %s136, %s137
    %p141 = pneg %p135
    %p142 = scmp.eq.s32.totalorder %s11, 1
    %p143 = por %p141, %p142
    %p144 = scmp.ne.s32.totalorder %s136, %s139
    %p145 = scmp.eq.s32.totalorder %s11, 0
    %p146 = por %p144, %p145
    %p147 = scmp.ne.s32.totalorder %s136, %s139
    %p148 = scmp.eq.s32.totalorder %s16, 1
    %p149 = por %p147, %p148
    %p150 = scmp.ne.s32.totalorder %s139, %s140
    %p151 = scmp.eq.s32.totalorder %s16, 0
    %p152 = por %p150, %p151
    %p153 = scmp.ne.s32.totalorder %s139, %s140
    %p154 = scmp.eq.s32.totalorder %s17, 1
    %p155 = por %p153, %p154
    %p157 = scmp.ne.s32.totalorder %s140, %s156
    %p158 = scmp.eq.s32.totalorder %s17, 0
    %p159 = por %p157, %p158
    %p160 = scmp.le.s32.totalorder 1, %s11
    %p161 = scmp.lt.s32.totalorder %s11, 3
    %p162 = pnand %p160, %p161
    %p163 = pneg %p162
    // Predicated region
    $region9: #{tpu_custom_call.1} parent=5 // pred_check
      _
    $region10: #{tpu_custom_call.1} parent=5 // pred_check_branch
      %165 = sbr.rel (%p162) target = $region12
    $region11: #{tpu_custom_call.1} parent=5 // pred_region
      %s166 = ssub.s32 %s11, 1
      // Predicated region
      $region13: #{tpu_custom_call.1} parent=11 // pred_check
        %p167 = pneg %p84
      $region14: #{tpu_custom_call.1} parent=11 // pred_check_branch
        %169 = sbr.rel (%p167) target = $region16
      $region15: #{tpu_custom_call.1} parent=11 // pred_region
        _
      $region16: #{tpu_custom_call.1} parent=11 // pred_fallthru
        _
      // Predicated region
      $region17: #{tpu_custom_call.1} parent=11 // pred_check
        %p170 = pneg %p105
      $region18: #{tpu_custom_call.1} parent=11 // pred_check_branch
        %172 = sbr.rel (%p170) target = $region20
      $region19: #{tpu_custom_call.1} parent=11 // pred_region
        _
      $region20: #{tpu_custom_call.1} parent=11 // pred_fallthru
        _
      // Predicated region
      $region21: #{tpu_custom_call.1} parent=11 // pred_check
        %p173 = pneg %p126
      $region22: #{tpu_custom_call.1} parent=11 // pred_check_branch
        %175 = sbr.rel (%p173) target = $region24
      $region23: #{tpu_custom_call.1} parent=11 // pred_region
        _
      $region24: #{tpu_custom_call.1} parent=11 // pred_fallthru
        _
    $region12: #{tpu_custom_call.1} parent=5 // pred_fallthru
      _
    %p176 = scmp.lt.s32.totalorder %s11, 2
    // Predicated region
    $region25: #{tpu_custom_call.1} parent=5 // pred_check
      %p177 = pneg %p176
    $region26: #{tpu_custom_call.1} parent=5 // pred_check_branch
      %179 = sbr.rel (%p177) target = $region28
    $region27: #{tpu_custom_call.1} parent=5 // pred_region
      // Predicated region
      $region29: #{tpu_custom_call.1} parent=27 // pred_check
        %p180 = pneg %p31
      $region30: #{tpu_custom_call.1} parent=27 // pred_check_branch
        %182 = sbr.rel (%p180) target = $region32
      $region31: #{tpu_custom_call.1} parent=27 // pred_region
        %s183 = smul.u32 16, %s11
        %p184 = scmp.lt.s32.totalorder %s183, 31
        %s185 = scalar_select %p184, %s183, 31
        %s186 = smul.addr %s185, 8
        %s187 = scalar_lea.vmem %s0, %s186
        %s188 = smul.u32 16, %s11
      $region32: #{tpu_custom_call.1} parent=27 // pred_fallthru
        _
      // Predicated region
      $region33: #{tpu_custom_call.1} parent=27 // pred_check
        %p189 = pneg %p57
      $region34: #{tpu_custom_call.1} parent=27 // pred_check_branch
        %191 = sbr.rel (%p189) target = $region36
      $region35: #{tpu_custom_call.1} parent=27 // pred_region
        %s192 = smul.u32 8, %s11
        %p193 = scmp.lt.s32.totalorder %s192, 15
        %s194 = scalar_select %p193, %s192, 15
        %s195 = smul.addr %s194, 2
        %s196 = smul.addr %s195, 8
        %s197 = scalar_lea.vmem %s1, %s196
        %s198 = smul.u32 8, %s11
      $region36: #{tpu_custom_call.1} parent=27 // pred_fallthru
        _
    $region28: #{tpu_custom_call.1} parent=5 // pred_fallthru
      _
    %p199 = scmp.le.s32.totalorder 1, %s11
    %p200 = scmp.lt.s32.totalorder %s11, 3
    %p201 = pnand %p199, %p200
    %p202 = pneg %p201
    // Predicated region
    $region37: #{tpu_custom_call.1} parent=5 // pred_check
      _
    $region38: #{tpu_custom_call.1} parent=5 // pred_check_branch
      %204 = sbr.rel (%p201) target = $region40
    $region39: #{tpu_custom_call.1} parent=5 // pred_region
      %s205 = ssub.s32 %s11, 1
      %s206 = smul.u32 16, %s16
      %p207 = scmp.lt.s32.totalorder %s206, 31
      %s208 = scalar_select %p207, %s206, 31
      %s209 = smul.addr %s208, 8
      %s210 = scalar_lea.vmem %s0, %s209
      %p211 = pneg %p37
      %p212 = pneg %p34
      %s213 = smul.u32 8, %s16
      %p214 = scmp.lt.s32.totalorder %s213, 15
      %s215 = scalar_select %p214, %s213, 15
      %s216 = smul.addr %s215, 2
      %s217 = smul.addr %s216, 8
      %s218 = scalar_lea.vmem %s1, %s217
      %p219 = pneg %p63
      %p220 = pneg %p60
      %p221 = pneg %p84
      %p222 = pneg %p81
      %p223 = pneg %p105
      %p224 = pneg %p102
      %p225 = pneg %p126
      %p226 = pneg %p123
      %p227 = pneg %p152
      %p228 = pneg %p149
      %s229 = smul.u32 16, %s16
      %p230 = scmp.lt.s32.totalorder %s229, 31
      %s231 = scalar_select %p230, %s229, 31
      %s232 = smul.addr %s231, 8
      %s233 = scalar_lea.vmem %s5, %s232
      %s234 = smul.u32 16, %s16
      %p235 = scmp.lt.s32.totalorder %s234, 31
      %s236 = scalar_select %p235, %s234, 31
      %s237 = smul.addr %s236, 8
      %s238 = scalar_lea.vmem %s0, %s237
      %s239 = smul.u32 16, %s16
      %s240 = smul.u32 8, %s16
      %p241 = scmp.lt.s32.totalorder %s240, 15
      %s242 = scalar_select %p241, %s240, 15
      %s243 = smul.addr %s242, 2
      %s244 = smul.addr %s243, 8
      %s245 = scalar_lea.vmem %s1, %s244
      %s246 = smul.u32 8, %s16
      %s247 = smul.u32 16, %s16
      %p248 = scmp.lt.s32.totalorder %s247, 31
      %s249 = scalar_select %p248, %s247, 31
      %s250 = smul.addr %s249, 8
      %s251 = scalar_lea.vmem %s5, %s250
      %s252 = smul.u32 16, %s16
      %v253 = vld [vmem:[%s238] sm:$0xff]
      %v254 = vld [vmem:[%s238 + $0x8] sm:$0xff]
      %v255 = vld [vmem:[%s238 + $0x10] sm:$0xff]
      %v256 = vld [vmem:[%s238 + $0x18] sm:$0xff]
      %v257 = vld [vmem:[%s238 + $0x20] sm:$0xff]
      %v258 = vld [vmem:[%s238 + $0x28] sm:$0xff]
      %v259 = vld [vmem:[%s238 + $0x30] sm:$0xff]
      %v260 = vld [vmem:[%s238 + $0x38] sm:$0xff]
      %v261 = vld [vmem:[%s238 + $0x40] sm:$0xff]
      %v262 = vld [vmem:[%s238 + $0x48] sm:$0xff]
      %v263 = vld [vmem:[%s238 + $0x50] sm:$0xff]
      %v264 = vld [vmem:[%s238 + $0x58] sm:$0xff]
      %v265 = vld [vmem:[%s238 + $0x60] sm:$0xff]
      %v266 = vld [vmem:[%s238 + $0x68] sm:$0xff]
      %v267 = vld [vmem:[%s238 + $0x70] sm:$0xff]
      %v268 = vld [vmem:[%s238 + $0x78] sm:$0xff]
      %v269 = vld [vmem:[%s245] sm:$0xff]
      %v270 = vld [vmem:[%s245 + $0x8] sm:$0xff]
      %v271 = vld [vmem:[%s245 + $0x10] sm:$0xff]
      %v272 = vld [vmem:[%s245 + $0x18] sm:$0xff]
      %v273 = vld [vmem:[%s245 + $0x20] sm:$0xff]
      %v274 = vld [vmem:[%s245 + $0x28] sm:$0xff]
      %v275 = vld [vmem:[%s245 + $0x30] sm:$0xff]
      %v276 = vld [vmem:[%s245 + $0x38] sm:$0xff]
      %v277 = vld [vmem:[%s245 + $0x40] sm:$0xff]
      %v278 = vld [vmem:[%s245 + $0x48] sm:$0xff]
      %v279 = vld [vmem:[%s245 + $0x50] sm:$0xff]
      %v280 = vld [vmem:[%s245 + $0x58] sm:$0xff]
      %v281 = vld [vmem:[%s245 + $0x60] sm:$0xff]
      %v282 = vld [vmem:[%s245 + $0x68] sm:$0xff]
      %v283 = vld [vmem:[%s245 + $0x70] sm:$0xff]
      %v284 = vld [vmem:[%s245 + $0x78] sm:$0xff]
      %286 = vset.pattern.permute.xlu0 0
      %287 = vperm.xlu0 %286, %v269
      %v288 = vpop.permute.xlu0 %287
      %291 = vset.pattern.permute.xlu0 0
      %292 = vperm.xlu0 %291, %v270
      %v293 = vpop.permute.xlu0 %292
      %296 = vset.pattern.permute.xlu0 0
      %297 = vperm.xlu0 %296, %v271
      %v298 = vpop.permute.xlu0 %297
      %301 = vset.pattern.permute.xlu0 0
      %302 = vperm.xlu0 %301, %v272
      %v303 = vpop.permute.xlu0 %302
      %306 = vset.pattern.permute.xlu0 0
      %307 = vperm.xlu0 %306, %v273
      %v308 = vpop.permute.xlu0 %307
      %311 = vset.pattern.permute.xlu0 0
      %312 = vperm.xlu0 %311, %v274
      %v313 = vpop.permute.xlu0 %312
      %316 = vset.pattern.permute.xlu0 0
      %317 = vperm.xlu0 %316, %v275
      %v318 = vpop.permute.xlu0 %317
      %321 = vset.pattern.permute.xlu0 0
      %322 = vperm.xlu0 %321, %v276
      %v323 = vpop.permute.xlu0 %322
      %326 = vset.pattern.permute.xlu0 0
      %327 = vperm.xlu0 %326, %v277
      %v328 = vpop.permute.xlu0 %327
      %331 = vset.pattern.permute.xlu0 0
      %332 = vperm.xlu0 %331, %v278
      %v333 = vpop.permute.xlu0 %332
      %336 = vset.pattern.permute.xlu0 0
      %337 = vperm.xlu0 %336, %v279
      %v338 = vpop.permute.xlu0 %337
      %341 = vset.pattern.permute.xlu0 0
      %342 = vperm.xlu0 %341, %v280
      %v343 = vpop.permute.xlu0 %342
      %346 = vset.pattern.permute.xlu0 0
      %347 = vperm.xlu0 %346, %v281
      %v348 = vpop.permute.xlu0 %347
      %351 = vset.pattern.permute.xlu0 0
      %352 = vperm.xlu0 %351, %v282
      %v353 = vpop.permute.xlu0 %352
      %356 = vset.pattern.permute.xlu0 0
      %357 = vperm.xlu0 %356, %v283
      %v358 = vpop.permute.xlu0 %357
      %361 = vset.pattern.permute.xlu0 0
      %362 = vperm.xlu0 %361, %v284
      %v363 = vpop.permute.xlu0 %362
      %v365 = vlaneseq
      %v366 = vshrl.u32 %v365, 7
      %v367 = vsub.s32 0, %v366
      %v368 = vrot.slane %v253, %v367
      %v369 = vlaneseq
      %v370 = vshrl.u32 %v369, 7
      %v371 = vsub.s32 0, %v370
      %v372 = vrot.slane %v255, %v371
      %v373 = vlaneseq
      %v374 = vshrl.u32 %v373, 7
      %v375 = vsub.s32 0, %v374
      %v376 = vrot.slane %v257, %v375
      %v377 = vlaneseq
      %v378 = vshrl.u32 %v377, 7
      %v379 = vsub.s32 0, %v378
      %v380 = vrot.slane %v259, %v379
      %v381 = vlaneseq
      %v382 = vshrl.u32 %v381, 7
      %v383 = vsub.s32 0, %v382
      %v384 = vrot.slane %v261, %v383
      %v385 = vlaneseq
      %v386 = vshrl.u32 %v385, 7
      %v387 = vsub.s32 0, %v386
      %v388 = vrot.slane %v263, %v387
      %v389 = vlaneseq
      %v390 = vshrl.u32 %v389, 7
      %v391 = vsub.s32 0, %v390
      %v392 = vrot.slane %v265, %v391
      %v393 = vlaneseq
      %v394 = vshrl.u32 %v393, 7
      %v395 = vsub.s32 0, %v394
      %v396 = vrot.slane %v267, %v395
      %v397 = vmul.f32 %v288, %v368
      %v398 = vmul.f32 %v293, %v368
      %v399 = vmul.f32 %v298, %v372
      %v400 = vmul.f32 %v303, %v372
      %v401 = vmul.f32 %v308, %v376
      %v402 = vmul.f32 %v313, %v376
      %v403 = vmul.f32 %v318, %v380
      %v404 = vmul.f32 %v323, %v380
      %v405 = vmul.f32 %v328, %v384
      %v406 = vmul.f32 %v333, %v384
      %v407 = vmul.f32 %v338, %v388
      %v408 = vmul.f32 %v343, %v388
      %v409 = vmul.f32 %v348, %v392
      %v410 = vmul.f32 %v353, %v392
      %v411 = vmul.f32 %v358, %v396
      %v412 = vmul.f32 %v363, %v396
      %413 = vset.pattern.permute.xlu0 1
      %414 = vperm.xlu0 %413, %v269
      %v415 = vpop.permute.xlu0 %414
      %417 = vset.pattern.permute.xlu0 1
      %418 = vperm.xlu0 %417, %v270
      %v419 = vpop.permute.xlu0 %418
      %421 = vset.pattern.permute.xlu0 1
      %422 = vperm.xlu0 %421, %v271
      %v423 = vpop.permute.xlu0 %422
      %425 = vset.pattern.permute.xlu0 1
      %426 = vperm.xlu0 %425, %v272
      %v427 = vpop.permute.xlu0 %426
      %429 = vset.pattern.permute.xlu0 1
      %430 = vperm.xlu0 %429, %v273
      %v431 = vpop.permute.xlu0 %430
      %433 = vset.pattern.permute.xlu0 1
      %434 = vperm.xlu0 %433, %v274
      %v435 = vpop.permute.xlu0 %434
      %437 = vset.pattern.permute.xlu0 1
      %438 = vperm.xlu0 %437, %v275
      %v439 = vpop.permute.xlu0 %438
      %441 = vset.pattern.permute.xlu0 1
      %442 = vperm.xlu0 %441, %v276
      %v443 = vpop.permute.xlu0 %442
      %445 = vset.pattern.permute.xlu0 1
      %446 = vperm.xlu0 %445, %v277
      %v447 = vpop.permute.xlu0 %446
      %449 = vset.pattern.permute.xlu0 1
      %450 = vperm.xlu0 %449, %v278
      %v451 = vpop.permute.xlu0 %450
      %453 = vset.pattern.permute.xlu0 1
      %454 = vperm.xlu0 %453, %v279
      %v455 = vpop.permute.xlu0 %454
      %457 = vset.pattern.permute.xlu0 1
      %458 = vperm.xlu0 %457, %v280
      %v459 = vpop.permute.xlu0 %458
      %461 = vset.pattern.permute.xlu0 1
      %462 = vperm.xlu0 %461, %v281
      %v463 = vpop.permute.xlu0 %462
      %465 = vset.pattern.permute.xlu0 1
      %466 = vperm.xlu0 %465, %v282
      %v467 = vpop.permute.xlu0 %466
      %469 = vset.pattern.permute.xlu0 1
      %470 = vperm.xlu0 %469, %v283
      %v471 = vpop.permute.xlu0 %470
      %473 = vset.pattern.permute.xlu0 1
      %474 = vperm.xlu0 %473, %v284
      %v475 = vpop.permute.xlu0 %474
      %v477 = vlaneseq
      %v478 = vshrl.u32 %v477, 7
      %v479 = vsub.s32 1, %v478
      %v480 = vrot.slane %v253, %v479
      %v481 = vlaneseq
      %v482 = vshrl.u32 %v481, 7
      %v483 = vsub.s32 1, %v482
      %v484 = vrot.slane %v255, %v483
      %v485 = vlaneseq
      %v486 = vshrl.u32 %v485, 7
      %v487 = vsub.s32 1, %v486
      %v488 = vrot.slane %v257, %v487
      %v489 = vlaneseq
      %v490 = vshrl.u32 %v489, 7
      %v491 = vsub.s32 1, %v490
      %v492 = vrot.slane %v259, %v491
      %v493 = vlaneseq
      %v494 = vshrl.u32 %v493, 7
      %v495 = vsub.s32 1, %v494
      %v496 = vrot.slane %v261, %v495
      %v497 = vlaneseq
      %v498 = vshrl.u32 %v497, 7
      %v499 = vsub.s32 1, %v498
      %v500 = vrot.slane %v263, %v499
      %v501 = vlaneseq
      %v502 = vshrl.u32 %v501, 7
      %v503 = vsub.s32 1, %v502
      %v504 = vrot.slane %v265, %v503
      %v505 = vlaneseq
      %v506 = vshrl.u32 %v505, 7
      %v507 = vsub.s32 1, %v506
      %v508 = vrot.slane %v267, %v507
      %v509 = vmul.f32 %v415, %v480
      %v510 = vmul.f32 %v419, %v480
      %v511 = vmul.f32 %v423, %v484
      %v512 = vmul.f32 %v427, %v484
      %v513 = vmul.f32 %v431, %v488
      %v514 = vmul.f32 %v435, %v488
      %v515 = vmul.f32 %v439, %v492
      %v516 = vmul.f32 %v443, %v492
      %v517 = vmul.f32 %v447, %v496
      %v518 = vmul.f32 %v451, %v496
      %v519 = vmul.f32 %v455, %v500
      %v520 = vmul.f32 %v459, %v500
      %v521 = vmul.f32 %v463, %v504
      %v522 = vmul.f32 %v467, %v504
      %v523 = vmul.f32 %v471, %v508
      %v524 = vmul.f32 %v475, %v508
      %v525 = vadd.f32 %v397, %v509
      %v526 = vadd.f32 %v398, %v510
      %v527 = vadd.f32 %v399, %v511
      %v528 = vadd.f32 %v400, %v512
      %v529 = vadd.f32 %v401, %v513
      %v530 = vadd.f32 %v402, %v514
      %v531 = vadd.f32 %v403, %v515
      %v532 = vadd.f32 %v404, %v516
      %v533 = vadd.f32 %v405, %v517
      %v534 = vadd.f32 %v406, %v518
      %v535 = vadd.f32 %v407, %v519
      %v536 = vadd.f32 %v408, %v520
      %v537 = vadd.f32 %v409, %v521
      %v538 = vadd.f32 %v410, %v522
      %v539 = vadd.f32 %v411, %v523
      %v540 = vadd.f32 %v412, %v524
      %541 = vset.pattern.permute.xlu0 2
      %542 = vperm.xlu0 %541, %v269
      %v543 = vpop.permute.xlu0 %542
      %545 = vset.pattern.permute.xlu0 2
      %546 = vperm.xlu0 %545, %v270
      %v547 = vpop.permute.xlu0 %546
      %549 = vset.pattern.permute.xlu0 2
      %550 = vperm.xlu0 %549, %v271
      %v551 = vpop.permute.xlu0 %550
      %553 = vset.pattern.permute.xlu0 2
      %554 = vperm.xlu0 %553, %v272
      %v555 = vpop.permute.xlu0 %554
      %557 = vset.pattern.permute.xlu0 2
      %558 = vperm.xlu0 %557, %v273
      %v559 = vpop.permute.xlu0 %558
      %561 = vset.pattern.permute.xlu0 2
      %562 = vperm.xlu0 %561, %v274
      %v563 = vpop.permute.xlu0 %562
      %565 = vset.pattern.permute.xlu0 2
      %566 = vperm.xlu0 %565, %v275
      %v567 = vpop.permute.xlu0 %566
      %569 = vset.pattern.permute.xlu0 2
      %570 = vperm.xlu0 %569, %v276
      %v571 = vpop.permute.xlu0 %570
      %573 = vset.pattern.permute.xlu0 2
      %574 = vperm.xlu0 %573, %v277
      %v575 = vpop.permute.xlu0 %574
      %577 = vset.pattern.permute.xlu0 2
      %578 = vperm.xlu0 %577, %v278
      %v579 = vpop.permute.xlu0 %578
      %581 = vset.pattern.permute.xlu0 2
      %582 = vperm.xlu0 %581, %v279
      %v583 = vpop.permute.xlu0 %582
      %585 = vset.pattern.permute.xlu0 2
      %586 = vperm.xlu0 %585, %v280
      %v587 = vpop.permute.xlu0 %586
      %589 = vset.pattern.permute.xlu0 2
      %590 = vperm.xlu0 %589, %v281
      %v591 = vpop.permute.xlu0 %590
      %593 = vset.pattern.permute.xlu0 2
      %594 = vperm.xlu0 %593, %v282
      %v595 = vpop.permute.xlu0 %594
      %597 = vset.pattern.permute.xlu0 2
      %598 = vperm.xlu0 %597, %v283
      %v599 = vpop.permute.xlu0 %598
      %601 = vset.pattern.permute.xlu0 2
      %602 = vperm.xlu0 %601, %v284
      %v603 = vpop.permute.xlu0 %602
      %v605 = vlaneseq
      %v606 = vshrl.u32 %v605, 7
      %v607 = vsub.s32 2, %v606
      %v608 = vrot.slane %v253, %v607
      %v609 = vlaneseq
      %v610 = vshrl.u32 %v609, 7
      %v611 = vsub.s32 2, %v610
      %v612 = vrot.slane %v255, %v611
      %v613 = vlaneseq
      %v614 = vshrl.u32 %v613, 7
      %v615 = vsub.s32 2, %v614
      %v616 = vrot.slane %v257, %v615
      %v617 = vlaneseq
      %v618 = vshrl.u32 %v617, 7
      %v619 = vsub.s32 2, %v618
      %v620 = vrot.slane %v259, %v619
      %v621 = vlaneseq
      %v622 = vshrl.u32 %v621, 7
      %v623 = vsub.s32 2, %v622
      %v624 = vrot.slane %v261, %v623
      %v625 = vlaneseq
      %v626 = vshrl.u32 %v625, 7
      %v627 = vsub.s32 2, %v626
      %v628 = vrot.slane %v263, %v627
      %v629 = vlaneseq
      %v630 = vshrl.u32 %v629, 7
      %v631 = vsub.s32 2, %v630
      %v632 = vrot.slane %v265, %v631
      %v633 = vlaneseq
      %v634 = vshrl.u32 %v633, 7
      %v635 = vsub.s32 2, %v634
      %v636 = vrot.slane %v267, %v635
      %v637 = vmul.f32 %v543, %v608
      %v638 = vmul.f32 %v547, %v608
      %v639 = vmul.f32 %v551, %v612
      %v640 = vmul.f32 %v555, %v612
      %v641 = vmul.f32 %v559, %v616
      %v642 = vmul.f32 %v563, %v616
      %v643 = vmul.f32 %v567, %v620
      %v644 = vmul.f32 %v571, %v620
      %v645 = vmul.f32 %v575, %v624
      %v646 = vmul.f32 %v579, %v624
      %v647 = vmul.f32 %v583, %v628
      %v648 = vmul.f32 %v587, %v628
      %v649 = vmul.f32 %v591, %v632
      %v650 = vmul.f32 %v595, %v632
      %v651 = vmul.f32 %v599, %v636
      %v652 = vmul.f32 %v603, %v636
      %v653 = vadd.f32 %v525, %v637
      %v654 = vadd.f32 %v526, %v638
      %v655 = vadd.f32 %v527, %v639
      %v656 = vadd.f32 %v528, %v640
      %v657 = vadd.f32 %v529, %v641
      %v658 = vadd.f32 %v530, %v642
      %v659 = vadd.f32 %v531, %v643
      %v660 = vadd.f32 %v532, %v644
      %v661 = vadd.f32 %v533, %v645
      %v662 = vadd.f32 %v534, %v646
      %v663 = vadd.f32 %v535, %v647
      %v664 = vadd.f32 %v536, %v648
      %v665 = vadd.f32 %v537, %v649
      %v666 = vadd.f32 %v538, %v650
      %v667 = vadd.f32 %v539, %v651
      %v668 = vadd.f32 %v540, %v652
      %669 = vset.pattern.permute.xlu0 3
      %670 = vperm.xlu0 %669, %v269
      %v671 = vpop.permute.xlu0 %670
      %673 = vset.pattern.permute.xlu0 3
      %674 = vperm.xlu0 %673, %v270
      %v675 = vpop.permute.xlu0 %674
      %677 = vset.pattern.permute.xlu0 3
      %678 = vperm.xlu0 %677, %v271
      %v679 = vpop.permute.xlu0 %678
      %681 = vset.pattern.permute.xlu0 3
      %682 = vperm.xlu0 %681, %v272
      %v683 = vpop.permute.xlu0 %682
      %685 = vset.pattern.permute.xlu0 3
      %686 = vperm.xlu0 %685, %v273
      %v687 = vpop.permute.xlu0 %686
      %689 = vset.pattern.permute.xlu0 3
      %690 = vperm.xlu0 %689, %v274
      %v691 = vpop.permute.xlu0 %690
      %693 = vset.pattern.permute.xlu0 3
      %694 = vperm.xlu0 %693, %v275
      %v695 = vpop.permute.xlu0 %694
      %697 = vset.pattern.permute.xlu0 3
      %698 = vperm.xlu0 %697, %v276
      %v699 = vpop.permute.xlu0 %698
      %701 = vset.pattern.permute.xlu0 3
      %702 = vperm.xlu0 %701, %v277
      %v703 = vpop.permute.xlu0 %702
      %705 = vset.pattern.permute.xlu0 3
      %706 = vperm.xlu0 %705, %v278
      %v707 = vpop.permute.xlu0 %706
      %709 = vset.pattern.permute.xlu0 3
      %710 = vperm.xlu0 %709, %v279
      %v711 = vpop.permute.xlu0 %710
      %713 = vset.pattern.permute.xlu0 3
      %714 = vperm.xlu0 %713, %v280
      %v715 = vpop.permute.xlu0 %714
      %717 = vset.pattern.permute.xlu0 3
      %718 = vperm.xlu0 %717, %v281
      %v719 = vpop.permute.xlu0 %718
      %721 = vset.pattern.permute.xlu0 3
      %722 = vperm.xlu0 %721, %v282
      %v723 = vpop.permute.xlu0 %722
      %725 = vset.pattern.permute.xlu0 3
      %726 = vperm.xlu0 %725, %v283
      %v727 = vpop.permute.xlu0 %726
      %729 = vset.pattern.permute.xlu0 3
      %730 = vperm.xlu0 %729, %v284
      %v731 = vpop.permute.xlu0 %730
      %v733 = vlaneseq
      %v734 = vshrl.u32 %v733, 7
      %v735 = vsub.s32 3, %v734
      %v736 = vrot.slane %v253, %v735
      %v737 = vlaneseq
      %v738 = vshrl.u32 %v737, 7
      %v739 = vsub.s32 3, %v738
      %v740 = vrot.slane %v255, %v739
      %v741 = vlaneseq
      %v742 = vshrl.u32 %v741, 7
      %v743 = vsub.s32 3, %v742
      %v744 = vrot.slane %v257, %v743
      %v745 = vlaneseq
      %v746 = vshrl.u32 %v745, 7
      %v747 = vsub.s32 3, %v746
      %v748 = vrot.slane %v259, %v747
      %v749 = vlaneseq
      %v750 = vshrl.u32 %v749, 7
      %v751 = vsub.s32 3, %v750
      %v752 = vrot.slane %v261, %v751
      %v753 = vlaneseq
      %v754 = vshrl.u32 %v753, 7
      %v755 = vsub.s32 3, %v754
      %v756 = vrot.slane %v263, %v755
      %v757 = vlaneseq
      %v758 = vshrl.u32 %v757, 7
      %v759 = vsub.s32 3, %v758
      %v760 = vrot.slane %v265, %v759
      %v761 = vlaneseq
      %v762 = vshrl.u32 %v761, 7
      %v763 = vsub.s32 3, %v762
      %v764 = vrot.slane %v267, %v763
      %v765 = vmul.f32 %v671, %v736
      %v766 = vmul.f32 %v675, %v736
      %v767 = vmul.f32 %v679, %v740
      %v768 = vmul.f32 %v683, %v740
      %v769 = vmul.f32 %v687, %v744
      %v770 = vmul.f32 %v691, %v744
      %v771 = vmul.f32 %v695, %v748
      %v772 = vmul.f32 %v699, %v748
      %v773 = vmul.f32 %v703, %v752
      %v774 = vmul.f32 %v707, %v752
      %v775 = vmul.f32 %v711, %v756
      %v776 = vmul.f32 %v715, %v756
      %v777 = vmul.f32 %v719, %v760
      %v778 = vmul.f32 %v723, %v760
      %v779 = vmul.f32 %v727, %v764
      %v780 = vmul.f32 %v731, %v764
      %v781 = vadd.f32 %v653, %v765
      %v782 = vadd.f32 %v654, %v766
      %v783 = vadd.f32 %v655, %v767
      %v784 = vadd.f32 %v656, %v768
      %v785 = vadd.f32 %v657, %v769
      %v786 = vadd.f32 %v658, %v770
      %v787 = vadd.f32 %v659, %v771
      %v788 = vadd.f32 %v660, %v772
      %v789 = vadd.f32 %v661, %v773
      %v790 = vadd.f32 %v662, %v774
      %v791 = vadd.f32 %v663, %v775
      %v792 = vadd.f32 %v664, %v776
      %v793 = vadd.f32 %v665, %v777
      %v794 = vadd.f32 %v666, %v778
      %v795 = vadd.f32 %v667, %v779
      %v796 = vadd.f32 %v668, %v780
      %797 = vset.pattern.permute.xlu0 4
      %798 = vperm.xlu0 %797, %v269
      %v799 = vpop.permute.xlu0 %798
      %801 = vset.pattern.permute.xlu0 4
      %802 = vperm.xlu0 %801, %v270
      %v803 = vpop.permute.xlu0 %802
      %805 = vset.pattern.permute.xlu0 4
      %806 = vperm.xlu0 %805, %v271
      %v807 = vpop.permute.xlu0 %806
      %809 = vset.pattern.permute.xlu0 4
      %810 = vperm.xlu0 %809, %v272
      %v811 = vpop.permute.xlu0 %810
      %813 = vset.pattern.permute.xlu0 4
      %814 = vperm.xlu0 %813, %v273
      %v815 = vpop.permute.xlu0 %814
      %817 = vset.pattern.permute.xlu0 4
      %818 = vperm.xlu0 %817, %v274
      %v819 = vpop.permute.xlu0 %818
      %821 = vset.pattern.permute.xlu0 4
      %822 = vperm.xlu0 %821, %v275
      %v823 = vpop.permute.xlu0 %822
      %825 = vset.pattern.permute.xlu0 4
      %826 = vperm.xlu0 %825, %v276
      %v827 = vpop.permute.xlu0 %826
      %829 = vset.pattern.permute.xlu0 4
      %830 = vperm.xlu0 %829, %v277
      %v831 = vpop.permute.xlu0 %830
      %833 = vset.pattern.permute.xlu0 4
      %834 = vperm.xlu0 %833, %v278
      %v835 = vpop.permute.xlu0 %834
      %837 = vset.pattern.permute.xlu0 4
      %838 = vperm.xlu0 %837, %v279
      %v839 = vpop.permute.xlu0 %838
      %841 = vset.pattern.permute.xlu0 4
      %842 = vperm.xlu0 %841, %v280
      %v843 = vpop.permute.xlu0 %842
      %845 = vset.pattern.permute.xlu0 4
      %846 = vperm.xlu0 %845, %v281
      %v847 = vpop.permute.xlu0 %846
      %849 = vset.pattern.permute.xlu0 4
      %850 = vperm.xlu0 %849, %v282
      %v851 = vpop.permute.xlu0 %850
      %853 = vset.pattern.permute.xlu0 4
      %854 = vperm.xlu0 %853, %v283
      %v855 = vpop.permute.xlu0 %854
      %857 = vset.pattern.permute.xlu0 4
      %858 = vperm.xlu0 %857, %v284
      %v859 = vpop.permute.xlu0 %858
      %v861 = vlaneseq
      %v862 = vshrl.u32 %v861, 7
      %v863 = vsub.s32 4, %v862
      %v864 = vrot.slane %v253, %v863
      %v865 = vlaneseq
      %v866 = vshrl.u32 %v865, 7
      %v867 = vsub.s32 4, %v866
      %v868 = vrot.slane %v255, %v867
      %v869 = vlaneseq
      %v870 = vshrl.u32 %v869, 7
      %v871 = vsub.s32 4, %v870
      %v872 = vrot.slane %v257, %v871
      %v873 = vlaneseq
      %v874 = vshrl.u32 %v873, 7
      %v875 = vsub.s32 4, %v874
      %v876 = vrot.slane %v259, %v875
      %v877 = vlaneseq
      %v878 = vshrl.u32 %v877, 7
      %v879 = vsub.s32 4, %v878
      %v880 = vrot.slane %v261, %v879
      %v881 = vlaneseq
      %v882 = vshrl.u32 %v881, 7
      %v883 = vsub.s32 4, %v882
      %v884 = vrot.slane %v263, %v883
      %v885 = vlaneseq
      %v886 = vshrl.u32 %v885, 7
      %v887 = vsub.s32 4, %v886
      %v888 = vrot.slane %v265, %v887
      %v889 = vlaneseq
      %v890 = vshrl.u32 %v889, 7
      %v891 = vsub.s32 4, %v890
      %v892 = vrot.slane %v267, %v891
      %v893 = vmul.f32 %v799, %v864
      %v894 = vmul.f32 %v803, %v864
      %v895 = vmul.f32 %v807, %v868
      %v896 = vmul.f32 %v811, %v868
      %v897 = vmul.f32 %v815, %v872
      %v898 = vmul.f32 %v819, %v872
      %v899 = vmul.f32 %v823, %v876
      %v900 = vmul.f32 %v827, %v876
      %v901 = vmul.f32 %v831, %v880
      %v902 = vmul.f32 %v835, %v880
      %v903 = vmul.f32 %v839, %v884
      %v904 = vmul.f32 %v843, %v884
      %v905 = vmul.f32 %v847, %v888
      %v906 = vmul.f32 %v851, %v888
      %v907 = vmul.f32 %v855, %v892
      %v908 = vmul.f32 %v859, %v892
      %v909 = vadd.f32 %v781, %v893
      %v910 = vadd.f32 %v782, %v894
      %v911 = vadd.f32 %v783, %v895
      %v912 = vadd.f32 %v784, %v896
      %v913 = vadd.f32 %v785, %v897
      %v914 = vadd.f32 %v786, %v898
      %v915 = vadd.f32 %v787, %v899
      %v916 = vadd.f32 %v788, %v900
      %v917 = vadd.f32 %v789, %v901
      %v918 = vadd.f32 %v790, %v902
      %v919 = vadd.f32 %v791, %v903
      %v920 = vadd.f32 %v792, %v904
      %v921 = vadd.f32 %v793, %v905
      %v922 = vadd.f32 %v794, %v906
      %v923 = vadd.f32 %v795, %v907
      %v924 = vadd.f32 %v796, %v908
      %925 = vset.pattern.permute.xlu0 5
      %926 = vperm.xlu0 %925, %v269
      %v927 = vpop.permute.xlu0 %926
      %929 = vset.pattern.permute.xlu0 5
      %930 = vperm.xlu0 %929, %v270
      %v931 = vpop.permute.xlu0 %930
      %933 = vset.pattern.permute.xlu0 5
      %934 = vperm.xlu0 %933, %v271
      %v935 = vpop.permute.xlu0 %934
      %937 = vset.pattern.permute.xlu0 5
      %938 = vperm.xlu0 %937, %v272
      %v939 = vpop.permute.xlu0 %938
      %941 = vset.pattern.permute.xlu0 5
      %942 = vperm.xlu0 %941, %v273
      %v943 = vpop.permute.xlu0 %942
      %945 = vset.pattern.permute.xlu0 5
      %946 = vperm.xlu0 %945, %v274
      %v947 = vpop.permute.xlu0 %946
      %949 = vset.pattern.permute.xlu0 5
      %950 = vperm.xlu0 %949, %v275
      %v951 = vpop.permute.xlu0 %950
      %953 = vset.pattern.permute.xlu0 5
      %954 = vperm.xlu0 %953, %v276
      %v955 = vpop.permute.xlu0 %954
      %957 = vset.pattern.permute.xlu0 5
      %958 = vperm.xlu0 %957, %v277
      %v959 = vpop.permute.xlu0 %958
      %961 = vset.pattern.permute.xlu0 5
      %962 = vperm.xlu0 %961, %v278
      %v963 = vpop.permute.xlu0 %962
      %965 = vset.pattern.permute.xlu0 5
      %966 = vperm.xlu0 %965, %v279
      %v967 = vpop.permute.xlu0 %966
      %969 = vset.pattern.permute.xlu0 5
      %970 = vperm.xlu0 %969, %v280
      %v971 = vpop.permute.xlu0 %970
      %973 = vset.pattern.permute.xlu0 5
      %974 = vperm.xlu0 %973, %v281
      %v975 = vpop.permute.xlu0 %974
      %977 = vset.pattern.permute.xlu0 5
      %978 = vperm.xlu0 %977, %v282
      %v979 = vpop.permute.xlu0 %978
      %981 = vset.pattern.permute.xlu0 5
      %982 = vperm.xlu0 %981, %v283
      %v983 = vpop.permute.xlu0 %982
      %985 = vset.pattern.permute.xlu0 5
      %986 = vperm.xlu0 %985, %v284
      %v987 = vpop.permute.xlu0 %986
      %v989 = vlaneseq
      %v990 = vshrl.u32 %v989, 7
      %v991 = vsub.s32 5, %v990
      %v992 = vrot.slane %v253, %v991
      %v993 = vlaneseq
      %v994 = vshrl.u32 %v993, 7
      %v995 = vsub.s32 5, %v994
      %v996 = vrot.slane %v255, %v995
      %v997 = vlaneseq
      %v998 = vshrl.u32 %v997, 7
      %v999 = vsub.s32 5, %v998
      %v1000 = vrot.slane %v257, %v999
      %v1001 = vlaneseq
      %v1002 = vshrl.u32 %v1001, 7
      %v1003 = vsub.s32 5, %v1002
      %v1004 = vrot.slane %v259, %v1003
      %v1005 = vlaneseq
      %v1006 = vshrl.u32 %v1005, 7
      %v1007 = vsub.s32 5, %v1006
      %v1008 = vrot.slane %v261, %v1007
      %v1009 = vlaneseq
      %v1010 = vshrl.u32 %v1009, 7
      %v1011 = vsub.s32 5, %v1010
      %v1012 = vrot.slane %v263, %v1011
      %v1013 = vlaneseq
      %v1014 = vshrl.u32 %v1013, 7
      %v1015 = vsub.s32 5, %v1014
      %v1016 = vrot.slane %v265, %v1015
      %v1017 = vlaneseq
      %v1018 = vshrl.u32 %v1017, 7
      %v1019 = vsub.s32 5, %v1018
      %v1020 = vrot.slane %v267, %v1019
      %v1021 = vmul.f32 %v927, %v992
      %v1022 = vmul.f32 %v931, %v992
      %v1023 = vmul.f32 %v935, %v996
      %v1024 = vmul.f32 %v939, %v996
      %v1025 = vmul.f32 %v943, %v1000
      %v1026 = vmul.f32 %v947, %v1000
      %v1027 = vmul.f32 %v951, %v1004
      %v1028 = vmul.f32 %v955, %v1004
      %v1029 = vmul.f32 %v959, %v1008
      %v1030 = vmul.f32 %v963, %v1008
      %v1031 = vmul.f32 %v967, %v1012
      %v1032 = vmul.f32 %v971, %v1012
      %v1033 = vmul.f32 %v975, %v1016
      %v1034 = vmul.f32 %v979, %v1016
      %v1035 = vmul.f32 %v983, %v1020
      %v1036 = vmul.f32 %v987, %v1020
      %v1037 = vadd.f32 %v909, %v1021
      %v1038 = vadd.f32 %v910, %v1022
      %v1039 = vadd.f32 %v911, %v1023
      %v1040 = vadd.f32 %v912, %v1024
      %v1041 = vadd.f32 %v913, %v1025
      %v1042 = vadd.f32 %v914, %v1026
      %v1043 = vadd.f32 %v915, %v1027
      %v1044 = vadd.f32 %v916, %v1028
      %v1045 = vadd.f32 %v917, %v1029
      %v1046 = vadd.f32 %v918, %v1030
      %v1047 = vadd.f32 %v919, %v1031
      %v1048 = vadd.f32 %v920, %v1032
      %v1049 = vadd.f32 %v921, %v1033
      %v1050 = vadd.f32 %v922, %v1034
      %v1051 = vadd.f32 %v923, %v1035
      %v1052 = vadd.f32 %v924, %v1036
      %1053 = vset.pattern.permute.xlu0 6
      %1054 = vperm.xlu0 %1053, %v269
      %v1055 = vpop.permute.xlu0 %1054
      %1057 = vset.pattern.permute.xlu0 6
      %1058 = vperm.xlu0 %1057, %v270
      %v1059 = vpop.permute.xlu0 %1058
      %1061 = vset.pattern.permute.xlu0 6
      %1062 = vperm.xlu0 %1061, %v271
      %v1063 = vpop.permute.xlu0 %1062
      %1065 = vset.pattern.permute.xlu0 6
      %1066 = vperm.xlu0 %1065, %v272
      %v1067 = vpop.permute.xlu0 %1066
      %1069 = vset.pattern.permute.xlu0 6
      %1070 = vperm.xlu0 %1069, %v273
      %v1071 = vpop.permute.xlu0 %1070
      %1073 = vset.pattern.permute.xlu0 6
      %1074 = vperm.xlu0 %1073, %v274
      %v1075 = vpop.permute.xlu0 %1074
      %1077 = vset.pattern.permute.xlu0 6
      %1078 = vperm.xlu0 %1077, %v275
      %v1079 = vpop.permute.xlu0 %1078
      %1081 = vset.pattern.permute.xlu0 6
      %1082 = vperm.xlu0 %1081, %v276
      %v1083 = vpop.permute.xlu0 %1082
      %1085 = vset.pattern.permute.xlu0 6
      %1086 = vperm.xlu0 %1085, %v277
      %v1087 = vpop.permute.xlu0 %1086
      %1089 = vset.pattern.permute.xlu0 6
      %1090 = vperm.xlu0 %1089, %v278
      %v1091 = vpop.permute.xlu0 %1090
      %1093 = vset.pattern.permute.xlu0 6
      %1094 = vperm.xlu0 %1093, %v279
      %v1095 = vpop.permute.xlu0 %1094
      %1097 = vset.pattern.permute.xlu0 6
      %1098 = vperm.xlu0 %1097, %v280
      %v1099 = vpop.permute.xlu0 %1098
      %1101 = vset.pattern.permute.xlu0 6
      %1102 = vperm.xlu0 %1101, %v281
      %v1103 = vpop.permute.xlu0 %1102
      %1105 = vset.pattern.permute.xlu0 6
      %1106 = vperm.xlu0 %1105, %v282
      %v1107 = vpop.permute.xlu0 %1106
      %1109 = vset.pattern.permute.xlu0 6
      %1110 = vperm.xlu0 %1109, %v283
      %v1111 = vpop.permute.xlu0 %1110
      %1113 = vset.pattern.permute.xlu0 6
      %1114 = vperm.xlu0 %1113, %v284
      %v1115 = vpop.permute.xlu0 %1114
      %v1117 = vlaneseq
      %v1118 = vshrl.u32 %v1117, 7
      %v1119 = vsub.s32 6, %v1118
      %v1120 = vrot.slane %v253, %v1119
      %v1121 = vlaneseq
      %v1122 = vshrl.u32 %v1121, 7
      %v1123 = vsub.s32 6, %v1122
      %v1124 = vrot.slane %v255, %v1123
      %v1125 = vlaneseq
      %v1126 = vshrl.u32 %v1125, 7
      %v1127 = vsub.s32 6, %v1126
      %v1128 = vrot.slane %v257, %v1127
      %v1129 = vlaneseq
      %v1130 = vshrl.u32 %v1129, 7
      %v1131 = vsub.s32 6, %v1130
      %v1132 = vrot.slane %v259, %v1131
      %v1133 = vlaneseq
      %v1134 = vshrl.u32 %v1133, 7
      %v1135 = vsub.s32 6, %v1134
      %v1136 = vrot.slane %v261, %v1135
      %v1137 = vlaneseq
      %v1138 = vshrl.u32 %v1137, 7
      %v1139 = vsub.s32 6, %v1138
      %v1140 = vrot.slane %v263, %v1139
      %v1141 = vlaneseq
      %v1142 = vshrl.u32 %v1141, 7
      %v1143 = vsub.s32 6, %v1142
      %v1144 = vrot.slane %v265, %v1143
      %v1145 = vlaneseq
      %v1146 = vshrl.u32 %v1145, 7
      %v1147 = vsub.s32 6, %v1146
      %v1148 = vrot.slane %v267, %v1147
      %v1149 = vmul.f32 %v1055, %v1120
      %v1150 = vmul.f32 %v1059, %v1120
      %v1151 = vmul.f32 %v1063, %v1124
      %v1152 = vmul.f32 %v1067, %v1124
      %v1153 = vmul.f32 %v1071, %v1128
      %v1154 = vmul.f32 %v1075, %v1128
      %v1155 = vmul.f32 %v1079, %v1132
      %v1156 = vmul.f32 %v1083, %v1132
      %v1157 = vmul.f32 %v1087, %v1136
      %v1158 = vmul.f32 %v1091, %v1136
      %v1159 = vmul.f32 %v1095, %v1140
      %v1160 = vmul.f32 %v1099, %v1140
      %v1161 = vmul.f32 %v1103, %v1144
      %v1162 = vmul.f32 %v1107, %v1144
      %v1163 = vmul.f32 %v1111, %v1148
      %v1164 = vmul.f32 %v1115, %v1148
      %v1165 = vadd.f32 %v1037, %v1149
      %v1166 = vadd.f32 %v1038, %v1150
      %v1167 = vadd.f32 %v1039, %v1151
      %v1168 = vadd.f32 %v1040, %v1152
      %v1169 = vadd.f32 %v1041, %v1153
      %v1170 = vadd.f32 %v1042, %v1154
      %v1171 = vadd.f32 %v1043, %v1155
      %v1172 = vadd.f32 %v1044, %v1156
      %v1173 = vadd.f32 %v1045, %v1157
      %v1174 = vadd.f32 %v1046, %v1158
      %v1175 = vadd.f32 %v1047, %v1159
      %v1176 = vadd.f32 %v1048, %v1160
      %v1177 = vadd.f32 %v1049, %v1161
      %v1178 = vadd.f32 %v1050, %v1162
      %v1179 = vadd.f32 %v1051, %v1163
      %v1180 = vadd.f32 %v1052, %v1164
      %1181 = vset.pattern.permute.xlu0 7
      %1182 = vperm.xlu0 %1181, %v269
      %v1183 = vpop.permute.xlu0 %1182
      %1185 = vset.pattern.permute.xlu0 7
      %1186 = vperm.xlu0 %1185, %v270
      %v1187 = vpop.permute.xlu0 %1186
      %1189 = vset.pattern.permute.xlu0 7
      %1190 = vperm.xlu0 %1189, %v271
      %v1191 = vpop.permute.xlu0 %1190
      %1193 = vset.pattern.permute.xlu0 7
      %1194 = vperm.xlu0 %1193, %v272
      %v1195 = vpop.permute.xlu0 %1194
      %1197 = vset.pattern.permute.xlu0 7
      %1198 = vperm.xlu0 %1197, %v273
      %v1199 = vpop.permute.xlu0 %1198
      %1201 = vset.pattern.permute.xlu0 7
      %1202 = vperm.xlu0 %1201, %v274
      %v1203 = vpop.permute.xlu0 %1202
      %1205 = vset.pattern.permute.xlu0 7
      %1206 = vperm.xlu0 %1205, %v275
      %v1207 = vpop.permute.xlu0 %1206
      %1209 = vset.pattern.permute.xlu0 7
      %1210 = vperm.xlu0 %1209, %v276
      %v1211 = vpop.permute.xlu0 %1210
      %1213 = vset.pattern.permute.xlu0 7
      %1214 = vperm.xlu0 %1213, %v277
      %v1215 = vpop.permute.xlu0 %1214
      %1217 = vset.pattern.permute.xlu0 7
      %1218 = vperm.xlu0 %1217, %v278
      %v1219 = vpop.permute.xlu0 %1218
      %1221 = vset.pattern.permute.xlu0 7
      %1222 = vperm.xlu0 %1221, %v279
      %v1223 = vpop.permute.xlu0 %1222
      %1225 = vset.pattern.permute.xlu0 7
      %1226 = vperm.xlu0 %1225, %v280
      %v1227 = vpop.permute.xlu0 %1226
      %1229 = vset.pattern.permute.xlu0 7
      %1230 = vperm.xlu0 %1229, %v281
      %v1231 = vpop.permute.xlu0 %1230
      %1233 = vset.pattern.permute.xlu0 7
      %1234 = vperm.xlu0 %1233, %v282
      %v1235 = vpop.permute.xlu0 %1234
      %1237 = vset.pattern.permute.xlu0 7
      %1238 = vperm.xlu0 %1237, %v283
      %v1239 = vpop.permute.xlu0 %1238
      %1241 = vset.pattern.permute.xlu0 7
      %1242 = vperm.xlu0 %1241, %v284
      %v1243 = vpop.permute.xlu0 %1242
      %v1245 = vlaneseq
      %v1246 = vshrl.u32 %v1245, 7
      %v1247 = vsub.s32 7, %v1246
      %v1248 = vrot.slane %v253, %v1247
      %v1249 = vlaneseq
      %v1250 = vshrl.u32 %v1249, 7
      %v1251 = vsub.s32 7, %v1250
      %v1252 = vrot.slane %v255, %v1251
      %v1253 = vlaneseq
      %v1254 = vshrl.u32 %v1253, 7
      %v1255 = vsub.s32 7, %v1254
      %v1256 = vrot.slane %v257, %v1255
      %v1257 = vlaneseq
      %v1258 = vshrl.u32 %v1257, 7
      %v1259 = vsub.s32 7, %v1258
      %v1260 = vrot.slane %v259, %v1259
      %v1261 = vlaneseq
      %v1262 = vshrl.u32 %v1261, 7
      %v1263 = vsub.s32 7, %v1262
      %v1264 = vrot.slane %v261, %v1263
      %v1265 = vlaneseq
      %v1266 = vshrl.u32 %v1265, 7
      %v1267 = vsub.s32 7, %v1266
      %v1268 = vrot.slane %v263, %v1267
      %v1269 = vlaneseq
      %v1270 = vshrl.u32 %v1269, 7
      %v1271 = vsub.s32 7, %v1270
      %v1272 = vrot.slane %v265, %v1271
      %v1273 = vlaneseq
      %v1274 = vshrl.u32 %v1273, 7
      %v1275 = vsub.s32 7, %v1274
      %v1276 = vrot.slane %v267, %v1275
      %v1277 = vmul.f32 %v1183, %v1248
      %v1278 = vmul.f32 %v1187, %v1248
      %v1279 = vmul.f32 %v1191, %v1252
      %v1280 = vmul.f32 %v1195, %v1252
      %v1281 = vmul.f32 %v1199, %v1256
      %v1282 = vmul.f32 %v1203, %v1256
      %v1283 = vmul.f32 %v1207, %v1260
      %v1284 = vmul.f32 %v1211, %v1260
      %v1285 = vmul.f32 %v1215, %v1264
      %v1286 = vmul.f32 %v1219, %v1264
      %v1287 = vmul.f32 %v1223, %v1268
      %v1288 = vmul.f32 %v1227, %v1268
      %v1289 = vmul.f32 %v1231, %v1272
      %v1290 = vmul.f32 %v1235, %v1272
      %v1291 = vmul.f32 %v1239, %v1276
      %v1292 = vmul.f32 %v1243, %v1276
      %v1293 = vadd.f32 %v1165, %v1277
      %v1294 = vadd.f32 %v1166, %v1278
      %v1295 = vadd.f32 %v1167, %v1279
      %v1296 = vadd.f32 %v1168, %v1280
      %v1297 = vadd.f32 %v1169, %v1281
      %v1298 = vadd.f32 %v1170, %v1282
      %v1299 = vadd.f32 %v1171, %v1283
      %v1300 = vadd.f32 %v1172, %v1284
      %v1301 = vadd.f32 %v1173, %v1285
      %v1302 = vadd.f32 %v1174, %v1286
      %v1303 = vadd.f32 %v1175, %v1287
      %v1304 = vadd.f32 %v1176, %v1288
      %v1305 = vadd.f32 %v1177, %v1289
      %v1306 = vadd.f32 %v1178, %v1290
      %v1307 = vadd.f32 %v1179, %v1291
      %v1308 = vadd.f32 %v1180, %v1292
      %1309 = vset.pattern.permute.xlu0 8
      %1310 = vperm.xlu0 %1309, %v269
      %v1311 = vpop.permute.xlu0 %1310
      %1313 = vset.pattern.permute.xlu0 8
      %1314 = vperm.xlu0 %1313, %v270
      %v1315 = vpop.permute.xlu0 %1314
      %1317 = vset.pattern.permute.xlu0 8
      %1318 = vperm.xlu0 %1317, %v271
      %v1319 = vpop.permute.xlu0 %1318
      %1321 = vset.pattern.permute.xlu0 8
      %1322 = vperm.xlu0 %1321, %v272
      %v1323 = vpop.permute.xlu0 %1322
      %1325 = vset.pattern.permute.xlu0 8
      %1326 = vperm.xlu0 %1325, %v273
      %v1327 = vpop.permute.xlu0 %1326
      %1329 = vset.pattern.permute.xlu0 8
      %1330 = vperm.xlu0 %1329, %v274
      %v1331 = vpop.permute.xlu0 %1330
      %1333 = vset.pattern.permute.xlu0 8
      %1334 = vperm.xlu0 %1333, %v275
      %v1335 = vpop.permute.xlu0 %1334
      %1337 = vset.pattern.permute.xlu0 8
      %1338 = vperm.xlu0 %1337, %v276
      %v1339 = vpop.permute.xlu0 %1338
      %1341 = vset.pattern.permute.xlu0 8
      %1342 = vperm.xlu0 %1341, %v277
      %v1343 = vpop.permute.xlu0 %1342
      %1345 = vset.pattern.permute.xlu0 8
      %1346 = vperm.xlu0 %1345, %v278
      %v1347 = vpop.permute.xlu0 %1346
      %1349 = vset.pattern.permute.xlu0 8
      %1350 = vperm.xlu0 %1349, %v279
      %v1351 = vpop.permute.xlu0 %1350
      %1353 = vset.pattern.permute.xlu0 8
      %1354 = vperm.xlu0 %1353, %v280
      %v1355 = vpop.permute.xlu0 %1354
      %1357 = vset.pattern.permute.xlu0 8
      %1358 = vperm.xlu0 %1357, %v281
      %v1359 = vpop.permute.xlu0 %1358
      %1361 = vset.pattern.permute.xlu0 8
      %1362 = vperm.xlu0 %1361, %v282
      %v1363 = vpop.permute.xlu0 %1362
      %1365 = vset.pattern.permute.xlu0 8
      %1366 = vperm.xlu0 %1365, %v283
      %v1367 = vpop.permute.xlu0 %1366
      %1369 = vset.pattern.permute.xlu0 8
      %1370 = vperm.xlu0 %1369, %v284
      %v1371 = vpop.permute.xlu0 %1370
      %v1373 = vlaneseq
      %v1374 = vshrl.u32 %v1373, 7
      %v1375 = vsub.s32 0, %v1374
      %v1376 = vrot.slane %v254, %v1375
      %v1377 = vlaneseq
      %v1378 = vshrl.u32 %v1377, 7
      %v1379 = vsub.s32 0, %v1378
      %v1380 = vrot.slane %v256, %v1379
      %v1381 = vlaneseq
      %v1382 = vshrl.u32 %v1381, 7
      %v1383 = vsub.s32 0, %v1382
      %v1384 = vrot.slane %v258, %v1383
      %v1385 = vlaneseq
      %v1386 = vshrl.u32 %v1385, 7
      %v1387 = vsub.s32 0, %v1386
      %v1388 = vrot.slane %v260, %v1387
      %v1389 = vlaneseq
      %v1390 = vshrl.u32 %v1389, 7
      %v1391 = vsub.s32 0, %v1390
      %v1392 = vrot.slane %v262, %v1391
      %v1393 = vlaneseq
      %v1394 = vshrl.u32 %v1393, 7
      %v1395 = vsub.s32 0, %v1394
      %v1396 = vrot.slane %v264, %v1395
      %v1397 = vlaneseq
      %v1398 = vshrl.u32 %v1397, 7
      %v1399 = vsub.s32 0, %v1398
      %v1400 = vrot.slane %v266, %v1399
      %v1401 = vlaneseq
      %v1402 = vshrl.u32 %v1401, 7
      %v1403 = vsub.s32 0, %v1402
      %v1404 = vrot.slane %v268, %v1403
      %v1405 = vmul.f32 %v1311, %v1376
      %v1406 = vmul.f32 %v1315, %v1376
      %v1407 = vmul.f32 %v1319, %v1380
      %v1408 = vmul.f32 %v1323, %v1380
      %v1409 = vmul.f32 %v1327, %v1384
      %v1410 = vmul.f32 %v1331, %v1384
      %v1411 = vmul.f32 %v1335, %v1388
      %v1412 = vmul.f32 %v1339, %v1388
      %v1413 = vmul.f32 %v1343, %v1392
      %v1414 = vmul.f32 %v1347, %v1392
      %v1415 = vmul.f32 %v1351, %v1396
      %v1416 = vmul.f32 %v1355, %v1396
      %v1417 = vmul.f32 %v1359, %v1400
      %v1418 = vmul.f32 %v1363, %v1400
      %v1419 = vmul.f32 %v1367, %v1404
      %v1420 = vmul.f32 %v1371, %v1404
      %v1421 = vadd.f32 %v1293, %v1405
      %v1422 = vadd.f32 %v1294, %v1406
      %v1423 = vadd.f32 %v1295, %v1407
      %v1424 = vadd.f32 %v1296, %v1408
      %v1425 = vadd.f32 %v1297, %v1409
      %v1426 = vadd.f32 %v1298, %v1410
      %v1427 = vadd.f32 %v1299, %v1411
      %v1428 = vadd.f32 %v1300, %v1412
      %v1429 = vadd.f32 %v1301, %v1413
      %v1430 = vadd.f32 %v1302, %v1414
      %v1431 = vadd.f32 %v1303, %v1415
      %v1432 = vadd.f32 %v1304, %v1416
      %v1433 = vadd.f32 %v1305, %v1417
      %v1434 = vadd.f32 %v1306, %v1418
      %v1435 = vadd.f32 %v1307, %v1419
      %v1436 = vadd.f32 %v1308, %v1420
      %1437 = vset.pattern.permute.xlu0 9
      %1438 = vperm.xlu0 %1437, %v269
      %v1439 = vpop.permute.xlu0 %1438
      %1441 = vset.pattern.permute.xlu0 9
      %1442 = vperm.xlu0 %1441, %v270
      %v1443 = vpop.permute.xlu0 %1442
      %1445 = vset.pattern.permute.xlu0 9
      %1446 = vperm.xlu0 %1445, %v271
      %v1447 = vpop.permute.xlu0 %1446
      %1449 = vset.pattern.permute.xlu0 9
      %1450 = vperm.xlu0 %1449, %v272
      %v1451 = vpop.permute.xlu0 %1450
      %1453 = vset.pattern.permute.xlu0 9
      %1454 = vperm.xlu0 %1453, %v273
      %v1455 = vpop.permute.xlu0 %1454
      %1457 = vset.pattern.permute.xlu0 9
      %1458 = vperm.xlu0 %1457, %v274
      %v1459 = vpop.permute.xlu0 %1458
      %1461 = vset.pattern.permute.xlu0 9
      %1462 = vperm.xlu0 %1461, %v275
      %v1463 = vpop.permute.xlu0 %1462
      %1465 = vset.pattern.permute.xlu0 9
      %1466 = vperm.xlu0 %1465, %v276
      %v1467 = vpop.permute.xlu0 %1466
      %1469 = vset.pattern.permute.xlu0 9
      %1470 = vperm.xlu0 %1469, %v277
      %v1471 = vpop.permute.xlu0 %1470
      %1473 = vset.pattern.permute.xlu0 9
      %1474 = vperm.xlu0 %1473, %v278
      %v1475 = vpop.permute.xlu0 %1474
      %1477 = vset.pattern.permute.xlu0 9
      %1478 = vperm.xlu0 %1477, %v279
      %v1479 = vpop.permute.xlu0 %1478
      %1481 = vset.pattern.permute.xlu0 9
      %1482 = vperm.xlu0 %1481, %v280
      %v1483 = vpop.permute.xlu0 %1482
      %1485 = vset.pattern.permute.xlu0 9
      %1486 = vperm.xlu0 %1485, %v281
      %v1487 = vpop.permute.xlu0 %1486
      %1489 = vset.pattern.permute.xlu0 9
      %1490 = vperm.xlu0 %1489, %v282
      %v1491 = vpop.permute.xlu0 %1490
      %1493 = vset.pattern.permute.xlu0 9
      %1494 = vperm.xlu0 %1493, %v283
      %v1495 = vpop.permute.xlu0 %1494
      %1497 = vset.pattern.permute.xlu0 9
      %1498 = vperm.xlu0 %1497, %v284
      %v1499 = vpop.permute.xlu0 %1498
      %v1501 = vlaneseq
      %v1502 = vshrl.u32 %v1501, 7
      %v1503 = vsub.s32 1, %v1502
      %v1504 = vrot.slane %v254, %v1503
      %v1505 = vlaneseq
      %v1506 = vshrl.u32 %v1505, 7
      %v1507 = vsub.s32 1, %v1506
      %v1508 = vrot.slane %v256, %v1507
      %v1509 = vlaneseq
      %v1510 = vshrl.u32 %v1509, 7
      %v1511 = vsub.s32 1, %v1510
      %v1512 = vrot.slane %v258, %v1511
      %v1513 = vlaneseq
      %v1514 = vshrl.u32 %v1513, 7
      %v1515 = vsub.s32 1, %v1514
      %v1516 = vrot.slane %v260, %v1515
      %v1517 = vlaneseq
      %v1518 = vshrl.u32 %v1517, 7
      %v1519 = vsub.s32 1, %v1518
      %v1520 = vrot.slane %v262, %v1519
      %v1521 = vlaneseq
      %v1522 = vshrl.u32 %v1521, 7
      %v1523 = vsub.s32 1, %v1522
      %v1524 = vrot.slane %v264, %v1523
      %v1525 = vlaneseq
      %v1526 = vshrl.u32 %v1525, 7
      %v1527 = vsub.s32 1, %v1526
      %v1528 = vrot.slane %v266, %v1527
      %v1529 = vlaneseq
      %v1530 = vshrl.u32 %v1529, 7
      %v1531 = vsub.s32 1, %v1530
      %v1532 = vrot.slane %v268, %v1531
      %v1533 = vmul.f32 %v1439, %v1504
      %v1534 = vmul.f32 %v1443, %v1504
      %v1535 = vmul.f32 %v1447, %v1508
      %v1536 = vmul.f32 %v1451, %v1508
      %v1537 = vmul.f32 %v1455, %v1512
      %v1538 = vmul.f32 %v1459, %v1512
      %v1539 = vmul.f32 %v1463, %v1516
      %v1540 = vmul.f32 %v1467, %v1516
      %v1541 = vmul.f32 %v1471, %v1520
      %v1542 = vmul.f32 %v1475, %v1520
      %v1543 = vmul.f32 %v1479, %v1524
      %v1544 = vmul.f32 %v1483, %v1524
      %v1545 = vmul.f32 %v1487, %v1528
      %v1546 = vmul.f32 %v1491, %v1528
      %v1547 = vmul.f32 %v1495, %v1532
      %v1548 = vmul.f32 %v1499, %v1532
      %v1549 = vadd.f32 %v1421, %v1533
      %v1550 = vadd.f32 %v1422, %v1534
      %v1551 = vadd.f32 %v1423, %v1535
      %v1552 = vadd.f32 %v1424, %v1536
      %v1553 = vadd.f32 %v1425, %v1537
      %v1554 = vadd.f32 %v1426, %v1538
      %v1555 = vadd.f32 %v1427, %v1539
      %v1556 = vadd.f32 %v1428, %v1540
      %v1557 = vadd.f32 %v1429, %v1541
      %v1558 = vadd.f32 %v1430, %v1542
      %v1559 = vadd.f32 %v1431, %v1543
      %v1560 = vadd.f32 %v1432, %v1544
      %v1561 = vadd.f32 %v1433, %v1545
      %v1562 = vadd.f32 %v1434, %v1546
      %v1563 = vadd.f32 %v1435, %v1547
      %v1564 = vadd.f32 %v1436, %v1548
      %1565 = vset.pattern.permute.xlu0 10
      %1566 = vperm.xlu0 %1565, %v269
      %v1567 = vpop.permute.xlu0 %1566
      %1569 = vset.pattern.permute.xlu0 10
      %1570 = vperm.xlu0 %1569, %v270
      %v1571 = vpop.permute.xlu0 %1570
      %1573 = vset.pattern.permute.xlu0 10
      %1574 = vperm.xlu0 %1573, %v271
      %v1575 = vpop.permute.xlu0 %1574
      %1577 = vset.pattern.permute.xlu0 10
      %1578 = vperm.xlu0 %1577, %v272
      %v1579 = vpop.permute.xlu0 %1578
      %1581 = vset.pattern.permute.xlu0 10
      %1582 = vperm.xlu0 %1581, %v273
      %v1583 = vpop.permute.xlu0 %1582
      %1585 = vset.pattern.permute.xlu0 10
      %1586 = vperm.xlu0 %1585, %v274
      %v1587 = vpop.permute.xlu0 %1586
      %1589 = vset.pattern.permute.xlu0 10
      %1590 = vperm.xlu0 %1589, %v275
      %v1591 = vpop.permute.xlu0 %1590
      %1593 = vset.pattern.permute.xlu0 10
      %1594 = vperm.xlu0 %1593, %v276
      %v1595 = vpop.permute.xlu0 %1594
      %1597 = vset.pattern.permute.xlu0 10
      %1598 = vperm.xlu0 %1597, %v277
      %v1599 = vpop.permute.xlu0 %1598
      %1601 = vset.pattern.permute.xlu0 10
      %1602 = vperm.xlu0 %1601, %v278
      %v1603 = vpop.permute.xlu0 %1602
      %1605 = vset.pattern.permute.xlu0 10
      %1606 = vperm.xlu0 %1605, %v279
      %v1607 = vpop.permute.xlu0 %1606
      %1609 = vset.pattern.permute.xlu0 10
      %1610 = vperm.xlu0 %1609, %v280
      %v1611 = vpop.permute.xlu0 %1610
      %1613 = vset.pattern.permute.xlu0 10
      %1614 = vperm.xlu0 %1613, %v281
      %v1615 = vpop.permute.xlu0 %1614
      %1617 = vset.pattern.permute.xlu0 10
      %1618 = vperm.xlu0 %1617, %v282
      %v1619 = vpop.permute.xlu0 %1618
      %1621 = vset.pattern.permute.xlu0 10
      %1622 = vperm.xlu0 %1621, %v283
      %v1623 = vpop.permute.xlu0 %1622
      %1625 = vset.pattern.permute.xlu0 10
      %1626 = vperm.xlu0 %1625, %v284
      %v1627 = vpop.permute.xlu0 %1626
      %v1629 = vlaneseq
      %v1630 = vshrl.u32 %v1629, 7
      %v1631 = vsub.s32 2, %v1630
      %v1632 = vrot.slane %v254, %v1631
      %v1633 = vlaneseq
      %v1634 = vshrl.u32 %v1633, 7
      %v1635 = vsub.s32 2, %v1634
      %v1636 = vrot.slane %v256, %v1635
      %v1637 = vlaneseq
      %v1638 = vshrl.u32 %v1637, 7
      %v1639 = vsub.s32 2, %v1638
      %v1640 = vrot.slane %v258, %v1639
      %v1641 = vlaneseq
      %v1642 = vshrl.u32 %v1641, 7
      %v1643 = vsub.s32 2, %v1642
      %v1644 = vrot.slane %v260, %v1643
      %v1645 = vlaneseq
      %v1646 = vshrl.u32 %v1645, 7
      %v1647 = vsub.s32 2, %v1646
      %v1648 = vrot.slane %v262, %v1647
      %v1649 = vlaneseq
      %v1650 = vshrl.u32 %v1649, 7
      %v1651 = vsub.s32 2, %v1650
      %v1652 = vrot.slane %v264, %v1651
      %v1653 = vlaneseq
      %v1654 = vshrl.u32 %v1653, 7
      %v1655 = vsub.s32 2, %v1654
      %v1656 = vrot.slane %v266, %v1655
      %v1657 = vlaneseq
      %v1658 = vshrl.u32 %v1657, 7
      %v1659 = vsub.s32 2, %v1658
      %v1660 = vrot.slane %v268, %v1659
      %v1661 = vmul.f32 %v1567, %v1632
      %v1662 = vmul.f32 %v1571, %v1632
      %v1663 = vmul.f32 %v1575, %v1636
      %v1664 = vmul.f32 %v1579, %v1636
      %v1665 = vmul.f32 %v1583, %v1640
      %v1666 = vmul.f32 %v1587, %v1640
      %v1667 = vmul.f32 %v1591, %v1644
      %v1668 = vmul.f32 %v1595, %v1644
      %v1669 = vmul.f32 %v1599, %v1648
      %v1670 = vmul.f32 %v1603, %v1648
      %v1671 = vmul.f32 %v1607, %v1652
      %v1672 = vmul.f32 %v1611, %v1652
      %v1673 = vmul.f32 %v1615, %v1656
      %v1674 = vmul.f32 %v1619, %v1656
      %v1675 = vmul.f32 %v1623, %v1660
      %v1676 = vmul.f32 %v1627, %v1660
      %v1677 = vadd.f32 %v1549, %v1661
      %v1678 = vadd.f32 %v1550, %v1662
      %v1679 = vadd.f32 %v1551, %v1663
      %v1680 = vadd.f32 %v1552, %v1664
      %v1681 = vadd.f32 %v1553, %v1665
      %v1682 = vadd.f32 %v1554, %v1666
      %v1683 = vadd.f32 %v1555, %v1667
      %v1684 = vadd.f32 %v1556, %v1668
      %v1685 = vadd.f32 %v1557, %v1669
      %v1686 = vadd.f32 %v1558, %v1670
      %v1687 = vadd.f32 %v1559, %v1671
      %v1688 = vadd.f32 %v1560, %v1672
      %v1689 = vadd.f32 %v1561, %v1673
      %v1690 = vadd.f32 %v1562, %v1674
      %v1691 = vadd.f32 %v1563, %v1675
      %v1692 = vadd.f32 %v1564, %v1676
      %1693 = vset.pattern.permute.xlu0 11
      %1694 = vperm.xlu0 %1693, %v269
      %v1695 = vpop.permute.xlu0 %1694
      %1697 = vset.pattern.permute.xlu0 11
      %1698 = vperm.xlu0 %1697, %v270
      %v1699 = vpop.permute.xlu0 %1698
      %1701 = vset.pattern.permute.xlu0 11
      %1702 = vperm.xlu0 %1701, %v271
      %v1703 = vpop.permute.xlu0 %1702
      %1705 = vset.pattern.permute.xlu0 11
      %1706 = vperm.xlu0 %1705, %v272
      %v1707 = vpop.permute.xlu0 %1706
      %1709 = vset.pattern.permute.xlu0 11
      %1710 = vperm.xlu0 %1709, %v273
      %v1711 = vpop.permute.xlu0 %1710
      %1713 = vset.pattern.permute.xlu0 11
      %1714 = vperm.xlu0 %1713, %v274
      %v1715 = vpop.permute.xlu0 %1714
      %1717 = vset.pattern.permute.xlu0 11
      %1718 = vperm.xlu0 %1717, %v275
      %v1719 = vpop.permute.xlu0 %1718
      %1721 = vset.pattern.permute.xlu0 11
      %1722 = vperm.xlu0 %1721, %v276
      %v1723 = vpop.permute.xlu0 %1722
      %1725 = vset.pattern.permute.xlu0 11
      %1726 = vperm.xlu0 %1725, %v277
      %v1727 = vpop.permute.xlu0 %1726
      %1729 = vset.pattern.permute.xlu0 11
      %1730 = vperm.xlu0 %1729, %v278
      %v1731 = vpop.permute.xlu0 %1730
      %1733 = vset.pattern.permute.xlu0 11
      %1734 = vperm.xlu0 %1733, %v279
      %v1735 = vpop.permute.xlu0 %1734
      %1737 = vset.pattern.permute.xlu0 11
      %1738 = vperm.xlu0 %1737, %v280
      %v1739 = vpop.permute.xlu0 %1738
      %1741 = vset.pattern.permute.xlu0 11
      %1742 = vperm.xlu0 %1741, %v281
      %v1743 = vpop.permute.xlu0 %1742
      %1745 = vset.pattern.permute.xlu0 11
      %1746 = vperm.xlu0 %1745, %v282
      %v1747 = vpop.permute.xlu0 %1746
      %1749 = vset.pattern.permute.xlu0 11
      %1750 = vperm.xlu0 %1749, %v283
      %v1751 = vpop.permute.xlu0 %1750
      %1753 = vset.pattern.permute.xlu0 11
      %1754 = vperm.xlu0 %1753, %v284
      %v1755 = vpop.permute.xlu0 %1754
      %v1757 = vlaneseq
      %v1758 = vshrl.u32 %v1757, 7
      %v1759 = vsub.s32 3, %v1758
      %v1760 = vrot.slane %v254, %v1759
      %v1761 = vlaneseq
      %v1762 = vshrl.u32 %v1761, 7
      %v1763 = vsub.s32 3, %v1762
      %v1764 = vrot.slane %v256, %v1763
      %v1765 = vlaneseq
      %v1766 = vshrl.u32 %v1765, 7
      %v1767 = vsub.s32 3, %v1766
      %v1768 = vrot.slane %v258, %v1767
      %v1769 = vlaneseq
      %v1770 = vshrl.u32 %v1769, 7
      %v1771 = vsub.s32 3, %v1770
      %v1772 = vrot.slane %v260, %v1771
      %v1773 = vlaneseq
      %v1774 = vshrl.u32 %v1773, 7
      %v1775 = vsub.s32 3, %v1774
      %v1776 = vrot.slane %v262, %v1775
      %v1777 = vlaneseq
      %v1778 = vshrl.u32 %v1777, 7
      %v1779 = vsub.s32 3, %v1778
      %v1780 = vrot.slane %v264, %v1779
      %v1781 = vlaneseq
      %v1782 = vshrl.u32 %v1781, 7
      %v1783 = vsub.s32 3, %v1782
      %v1784 = vrot.slane %v266, %v1783
      %v1785 = vlaneseq
      %v1786 = vshrl.u32 %v1785, 7
      %v1787 = vsub.s32 3, %v1786
      %v1788 = vrot.slane %v268, %v1787
      %v1789 = vmul.f32 %v1695, %v1760
      %v1790 = vmul.f32 %v1699, %v1760
      %v1791 = vmul.f32 %v1703, %v1764
      %v1792 = vmul.f32 %v1707, %v1764
      %v1793 = vmul.f32 %v1711, %v1768
      %v1794 = vmul.f32 %v1715, %v1768
      %v1795 = vmul.f32 %v1719, %v1772
      %v1796 = vmul.f32 %v1723, %v1772
      %v1797 = vmul.f32 %v1727, %v1776
      %v1798 = vmul.f32 %v1731, %v1776
      %v1799 = vmul.f32 %v1735, %v1780
      %v1800 = vmul.f32 %v1739, %v1780
      %v1801 = vmul.f32 %v1743, %v1784
      %v1802 = vmul.f32 %v1747, %v1784
      %v1803 = vmul.f32 %v1751, %v1788
      %v1804 = vmul.f32 %v1755, %v1788
      %v1805 = vadd.f32 %v1677, %v1789
      %v1806 = vadd.f32 %v1678, %v1790
      %v1807 = vadd.f32 %v1679, %v1791
      %v1808 = vadd.f32 %v1680, %v1792
      %v1809 = vadd.f32 %v1681, %v1793
      %v1810 = vadd.f32 %v1682, %v1794
      %v1811 = vadd.f32 %v1683, %v1795
      %v1812 = vadd.f32 %v1684, %v1796
      %v1813 = vadd.f32 %v1685, %v1797
      %v1814 = vadd.f32 %v1686, %v1798
      %v1815 = vadd.f32 %v1687, %v1799
      %v1816 = vadd.f32 %v1688, %v1800
      %v1817 = vadd.f32 %v1689, %v1801
      %v1818 = vadd.f32 %v1690, %v1802
      %v1819 = vadd.f32 %v1691, %v1803
      %v1820 = vadd.f32 %v1692, %v1804
      %1821 = vset.pattern.permute.xlu0 12
      %1822 = vperm.xlu0 %1821, %v269
      %v1823 = vpop.permute.xlu0 %1822
      %1825 = vset.pattern.permute.xlu0 12
      %1826 = vperm.xlu0 %1825, %v270
      %v1827 = vpop.permute.xlu0 %1826
      %1829 = vset.pattern.permute.xlu0 12
      %1830 = vperm.xlu0 %1829, %v271
      %v1831 = vpop.permute.xlu0 %1830
      %1833 = vset.pattern.permute.xlu0 12
      %1834 = vperm.xlu0 %1833, %v272
      %v1835 = vpop.permute.xlu0 %1834
      %1837 = vset.pattern.permute.xlu0 12
      %1838 = vperm.xlu0 %1837, %v273
      %v1839 = vpop.permute.xlu0 %1838
      %1841 = vset.pattern.permute.xlu0 12
      %1842 = vperm.xlu0 %1841, %v274
      %v1843 = vpop.permute.xlu0 %1842
      %1845 = vset.pattern.permute.xlu0 12
      %1846 = vperm.xlu0 %1845, %v275
      %v1847 = vpop.permute.xlu0 %1846
      %1849 = vset.pattern.permute.xlu0 12
      %1850 = vperm.xlu0 %1849, %v276
      %v1851 = vpop.permute.xlu0 %1850
      %1853 = vset.pattern.permute.xlu0 12
      %1854 = vperm.xlu0 %1853, %v277
      %v1855 = vpop.permute.xlu0 %1854
      %1857 = vset.pattern.permute.xlu0 12
      %1858 = vperm.xlu0 %1857, %v278
      %v1859 = vpop.permute.xlu0 %1858
      %1861 = vset.pattern.permute.xlu0 12
      %1862 = vperm.xlu0 %1861, %v279
      %v1863 = vpop.permute.xlu0 %1862
      %1865 = vset.pattern.permute.xlu0 12
      %1866 = vperm.xlu0 %1865, %v280
      %v1867 = vpop.permute.xlu0 %1866
      %1869 = vset.pattern.permute.xlu0 12
      %1870 = vperm.xlu0 %1869, %v281
      %v1871 = vpop.permute.xlu0 %1870
      %1873 = vset.pattern.permute.xlu0 12
      %1874 = vperm.xlu0 %1873, %v282
      %v1875 = vpop.permute.xlu0 %1874
      %1877 = vset.pattern.permute.xlu0 12
      %1878 = vperm.xlu0 %1877, %v283
      %v1879 = vpop.permute.xlu0 %1878
      %1881 = vset.pattern.permute.xlu0 12
      %1882 = vperm.xlu0 %1881, %v284
      %v1883 = vpop.permute.xlu0 %1882
      %v1885 = vlaneseq
      %v1886 = vshrl.u32 %v1885, 7
      %v1887 = vsub.s32 4, %v1886
      %v1888 = vrot.slane %v254, %v1887
      %v1889 = vlaneseq
      %v1890 = vshrl.u32 %v1889, 7
      %v1891 = vsub.s32 4, %v1890
      %v1892 = vrot.slane %v256, %v1891
      %v1893 = vlaneseq
      %v1894 = vshrl.u32 %v1893, 7
      %v1895 = vsub.s32 4, %v1894
      %v1896 = vrot.slane %v258, %v1895
      %v1897 = vlaneseq
      %v1898 = vshrl.u32 %v1897, 7
      %v1899 = vsub.s32 4, %v1898
      %v1900 = vrot.slane %v260, %v1899
      %v1901 = vlaneseq
      %v1902 = vshrl.u32 %v1901, 7
      %v1903 = vsub.s32 4, %v1902
      %v1904 = vrot.slane %v262, %v1903
      %v1905 = vlaneseq
      %v1906 = vshrl.u32 %v1905, 7
      %v1907 = vsub.s32 4, %v1906
      %v1908 = vrot.slane %v264, %v1907
      %v1909 = vlaneseq
      %v1910 = vshrl.u32 %v1909, 7
      %v1911 = vsub.s32 4, %v1910
      %v1912 = vrot.slane %v266, %v1911
      %v1913 = vlaneseq
      %v1914 = vshrl.u32 %v1913, 7
      %v1915 = vsub.s32 4, %v1914
      %v1916 = vrot.slane %v268, %v1915
      %v1917 = vmul.f32 %v1823, %v1888
      %v1918 = vmul.f32 %v1827, %v1888
      %v1919 = vmul.f32 %v1831, %v1892
      %v1920 = vmul.f32 %v1835, %v1892
      %v1921 = vmul.f32 %v1839, %v1896
      %v1922 = vmul.f32 %v1843, %v1896
      %v1923 = vmul.f32 %v1847, %v1900
      %v1924 = vmul.f32 %v1851, %v1900
      %v1925 = vmul.f32 %v1855, %v1904
      %v1926 = vmul.f32 %v1859, %v1904
      %v1927 = vmul.f32 %v1863, %v1908
      %v1928 = vmul.f32 %v1867, %v1908
      %v1929 = vmul.f32 %v1871, %v1912
      %v1930 = vmul.f32 %v1875, %v1912
      %v1931 = vmul.f32 %v1879, %v1916
      %v1932 = vmul.f32 %v1883, %v1916
      %v1933 = vadd.f32 %v1805, %v1917
      %v1934 = vadd.f32 %v1806, %v1918
      %v1935 = vadd.f32 %v1807, %v1919
      %v1936 = vadd.f32 %v1808, %v1920
      %v1937 = vadd.f32 %v1809, %v1921
      %v1938 = vadd.f32 %v1810, %v1922
      %v1939 = vadd.f32 %v1811, %v1923
      %v1940 = vadd.f32 %v1812, %v1924
      %v1941 = vadd.f32 %v1813, %v1925
      %v1942 = vadd.f32 %v1814, %v1926
      %v1943 = vadd.f32 %v1815, %v1927
      %v1944 = vadd.f32 %v1816, %v1928
      %v1945 = vadd.f32 %v1817, %v1929
      %v1946 = vadd.f32 %v1818, %v1930
      %v1947 = vadd.f32 %v1819, %v1931
      %v1948 = vadd.f32 %v1820, %v1932
      %1949 = vset.pattern.permute.xlu0 13
      %1950 = vperm.xlu0 %1949, %v269
      %v1951 = vpop.permute.xlu0 %1950
      %1953 = vset.pattern.permute.xlu0 13
      %1954 = vperm.xlu0 %1953, %v270
      %v1955 = vpop.permute.xlu0 %1954
      %1957 = vset.pattern.permute.xlu0 13
      %1958 = vperm.xlu0 %1957, %v271
      %v1959 = vpop.permute.xlu0 %1958
      %1961 = vset.pattern.permute.xlu0 13
      %1962 = vperm.xlu0 %1961, %v272
      %v1963 = vpop.permute.xlu0 %1962
      %1965 = vset.pattern.permute.xlu0 13
      %1966 = vperm.xlu0 %1965, %v273
      %v1967 = vpop.permute.xlu0 %1966
      %1969 = vset.pattern.permute.xlu0 13
      %1970 = vperm.xlu0 %1969, %v274
      %v1971 = vpop.permute.xlu0 %1970
      %1973 = vset.pattern.permute.xlu0 13
      %1974 = vperm.xlu0 %1973, %v275
      %v1975 = vpop.permute.xlu0 %1974
      %1977 = vset.pattern.permute.xlu0 13
      %1978 = vperm.xlu0 %1977, %v276
      %v1979 = vpop.permute.xlu0 %1978
      %1981 = vset.pattern.permute.xlu0 13
      %1982 = vperm.xlu0 %1981, %v277
      %v1983 = vpop.permute.xlu0 %1982
      %1985 = vset.pattern.permute.xlu0 13
      %1986 = vperm.xlu0 %1985, %v278
      %v1987 = vpop.permute.xlu0 %1986
      %1989 = vset.pattern.permute.xlu0 13
      %1990 = vperm.xlu0 %1989, %v279
      %v1991 = vpop.permute.xlu0 %1990
      %1993 = vset.pattern.permute.xlu0 13
      %1994 = vperm.xlu0 %1993, %v280
      %v1995 = vpop.permute.xlu0 %1994
      %1997 = vset.pattern.permute.xlu0 13
      %1998 = vperm.xlu0 %1997, %v281
      %v1999 = vpop.permute.xlu0 %1998
      %2001 = vset.pattern.permute.xlu0 13
      %2002 = vperm.xlu0 %2001, %v282
      %v2003 = vpop.permute.xlu0 %2002
      %2005 = vset.pattern.permute.xlu0 13
      %2006 = vperm.xlu0 %2005, %v283
      %v2007 = vpop.permute.xlu0 %2006
      %2009 = vset.pattern.permute.xlu0 13
      %2010 = vperm.xlu0 %2009, %v284
      %v2011 = vpop.permute.xlu0 %2010
      %v2013 = vlaneseq
      %v2014 = vshrl.u32 %v2013, 7
      %v2015 = vsub.s32 5, %v2014
      %v2016 = vrot.slane %v254, %v2015
      %v2017 = vlaneseq
      %v2018 = vshrl.u32 %v2017, 7
      %v2019 = vsub.s32 5, %v2018
      %v2020 = vrot.slane %v256, %v2019
      %v2021 = vlaneseq
      %v2022 = vshrl.u32 %v2021, 7
      %v2023 = vsub.s32 5, %v2022
      %v2024 = vrot.slane %v258, %v2023
      %v2025 = vlaneseq
      %v2026 = vshrl.u32 %v2025, 7
      %v2027 = vsub.s32 5, %v2026
      %v2028 = vrot.slane %v260, %v2027
      %v2029 = vlaneseq
      %v2030 = vshrl.u32 %v2029, 7
      %v2031 = vsub.s32 5, %v2030
      %v2032 = vrot.slane %v262, %v2031
      %v2033 = vlaneseq
      %v2034 = vshrl.u32 %v2033, 7
      %v2035 = vsub.s32 5, %v2034
      %v2036 = vrot.slane %v264, %v2035
      %v2037 = vlaneseq
      %v2038 = vshrl.u32 %v2037, 7
      %v2039 = vsub.s32 5, %v2038
      %v2040 = vrot.slane %v266, %v2039
      %v2041 = vlaneseq
      %v2042 = vshrl.u32 %v2041, 7
      %v2043 = vsub.s32 5, %v2042
      %v2044 = vrot.slane %v268, %v2043
      %v2045 = vmul.f32 %v1951, %v2016
      %v2046 = vmul.f32 %v1955, %v2016
      %v2047 = vmul.f32 %v1959, %v2020
      %v2048 = vmul.f32 %v1963, %v2020
      %v2049 = vmul.f32 %v1967, %v2024
      %v2050 = vmul.f32 %v1971, %v2024
      %v2051 = vmul.f32 %v1975, %v2028
      %v2052 = vmul.f32 %v1979, %v2028
      %v2053 = vmul.f32 %v1983, %v2032
      %v2054 = vmul.f32 %v1987, %v2032
      %v2055 = vmul.f32 %v1991, %v2036
      %v2056 = vmul.f32 %v1995, %v2036
      %v2057 = vmul.f32 %v1999, %v2040
      %v2058 = vmul.f32 %v2003, %v2040
      %v2059 = vmul.f32 %v2007, %v2044
      %v2060 = vmul.f32 %v2011, %v2044
      %v2061 = vadd.f32 %v1933, %v2045
      %v2062 = vadd.f32 %v1934, %v2046
      %v2063 = vadd.f32 %v1935, %v2047
      %v2064 = vadd.f32 %v1936, %v2048
      %v2065 = vadd.f32 %v1937, %v2049
      %v2066 = vadd.f32 %v1938, %v2050
      %v2067 = vadd.f32 %v1939, %v2051
      %v2068 = vadd.f32 %v1940, %v2052
      %v2069 = vadd.f32 %v1941, %v2053
      %v2070 = vadd.f32 %v1942, %v2054
      %v2071 = vadd.f32 %v1943, %v2055
      %v2072 = vadd.f32 %v1944, %v2056
      %v2073 = vadd.f32 %v1945, %v2057
      %v2074 = vadd.f32 %v1946, %v2058
      %v2075 = vadd.f32 %v1947, %v2059
      %v2076 = vadd.f32 %v1948, %v2060
      %2077 = vset.pattern.permute.xlu0 14
      %2078 = vperm.xlu0 %2077, %v269
      %v2079 = vpop.permute.xlu0 %2078
      %2081 = vset.pattern.permute.xlu0 14
      %2082 = vperm.xlu0 %2081, %v270
      %v2083 = vpop.permute.xlu0 %2082
      %2085 = vset.pattern.permute.xlu0 14
      %2086 = vperm.xlu0 %2085, %v271
      %v2087 = vpop.permute.xlu0 %2086
      %2089 = vset.pattern.permute.xlu0 14
      %2090 = vperm.xlu0 %2089, %v272
      %v2091 = vpop.permute.xlu0 %2090
      %2093 = vset.pattern.permute.xlu0 14
      %2094 = vperm.xlu0 %2093, %v273
      %v2095 = vpop.permute.xlu0 %2094
      %2097 = vset.pattern.permute.xlu0 14
      %2098 = vperm.xlu0 %2097, %v274
      %v2099 = vpop.permute.xlu0 %2098
      %2101 = vset.pattern.permute.xlu0 14
      %2102 = vperm.xlu0 %2101, %v275
      %v2103 = vpop.permute.xlu0 %2102
      %2105 = vset.pattern.permute.xlu0 14
      %2106 = vperm.xlu0 %2105, %v276
      %v2107 = vpop.permute.xlu0 %2106
      %2109 = vset.pattern.permute.xlu0 14
      %2110 = vperm.xlu0 %2109, %v277
      %v2111 = vpop.permute.xlu0 %2110
      %2113 = vset.pattern.permute.xlu0 14
      %2114 = vperm.xlu0 %2113, %v278
      %v2115 = vpop.permute.xlu0 %2114
      %2117 = vset.pattern.permute.xlu0 14
      %2118 = vperm.xlu0 %2117, %v279
      %v2119 = vpop.permute.xlu0 %2118
      %2121 = vset.pattern.permute.xlu0 14
      %2122 = vperm.xlu0 %2121, %v280
      %v2123 = vpop.permute.xlu0 %2122
      %2125 = vset.pattern.permute.xlu0 14
      %2126 = vperm.xlu0 %2125, %v281
      %v2127 = vpop.permute.xlu0 %2126
      %2129 = vset.pattern.permute.xlu0 14
      %2130 = vperm.xlu0 %2129, %v282
      %v2131 = vpop.permute.xlu0 %2130
      %2133 = vset.pattern.permute.xlu0 14
      %2134 = vperm.xlu0 %2133, %v283
      %v2135 = vpop.permute.xlu0 %2134
      %2137 = vset.pattern.permute.xlu0 14
      %2138 = vperm.xlu0 %2137, %v284
      %v2139 = vpop.permute.xlu0 %2138
      %v2141 = vlaneseq
      %v2142 = vshrl.u32 %v2141, 7
      %v2143 = vsub.s32 6, %v2142
      %v2144 = vrot.slane %v254, %v2143
      %v2145 = vlaneseq
      %v2146 = vshrl.u32 %v2145, 7
      %v2147 = vsub.s32 6, %v2146
      %v2148 = vrot.slane %v256, %v2147
      %v2149 = vlaneseq
      %v2150 = vshrl.u32 %v2149, 7
      %v2151 = vsub.s32 6, %v2150
      %v2152 = vrot.slane %v258, %v2151
      %v2153 = vlaneseq
      %v2154 = vshrl.u32 %v2153, 7
      %v2155 = vsub.s32 6, %v2154
      %v2156 = vrot.slane %v260, %v2155
      %v2157 = vlaneseq
      %v2158 = vshrl.u32 %v2157, 7
      %v2159 = vsub.s32 6, %v2158
      %v2160 = vrot.slane %v262, %v2159
      %v2161 = vlaneseq
      %v2162 = vshrl.u32 %v2161, 7
      %v2163 = vsub.s32 6, %v2162
      %v2164 = vrot.slane %v264, %v2163
      %v2165 = vlaneseq
      %v2166 = vshrl.u32 %v2165, 7
      %v2167 = vsub.s32 6, %v2166
      %v2168 = vrot.slane %v266, %v2167
      %v2169 = vlaneseq
      %v2170 = vshrl.u32 %v2169, 7
      %v2171 = vsub.s32 6, %v2170
      %v2172 = vrot.slane %v268, %v2171
      %v2173 = vmul.f32 %v2079, %v2144
      %v2174 = vmul.f32 %v2083, %v2144
      %v2175 = vmul.f32 %v2087, %v2148
      %v2176 = vmul.f32 %v2091, %v2148
      %v2177 = vmul.f32 %v2095, %v2152
      %v2178 = vmul.f32 %v2099, %v2152
      %v2179 = vmul.f32 %v2103, %v2156
      %v2180 = vmul.f32 %v2107, %v2156
      %v2181 = vmul.f32 %v2111, %v2160
      %v2182 = vmul.f32 %v2115, %v2160
      %v2183 = vmul.f32 %v2119, %v2164
      %v2184 = vmul.f32 %v2123, %v2164
      %v2185 = vmul.f32 %v2127, %v2168
      %v2186 = vmul.f32 %v2131, %v2168
      %v2187 = vmul.f32 %v2135, %v2172
      %v2188 = vmul.f32 %v2139, %v2172
      %v2189 = vadd.f32 %v2061, %v2173
      %v2190 = vadd.f32 %v2062, %v2174
      %v2191 = vadd.f32 %v2063, %v2175
      %v2192 = vadd.f32 %v2064, %v2176
      %v2193 = vadd.f32 %v2065, %v2177
      %v2194 = vadd.f32 %v2066, %v2178
      %v2195 = vadd.f32 %v2067, %v2179
      %v2196 = vadd.f32 %v2068, %v2180
      %v2197 = vadd.f32 %v2069, %v2181
      %v2198 = vadd.f32 %v2070, %v2182
      %v2199 = vadd.f32 %v2071, %v2183
      %v2200 = vadd.f32 %v2072, %v2184
      %v2201 = vadd.f32 %v2073, %v2185
      %v2202 = vadd.f32 %v2074, %v2186
      %v2203 = vadd.f32 %v2075, %v2187
      %v2204 = vadd.f32 %v2076, %v2188
      %2205 = vset.pattern.permute.xlu0 15
      %2206 = vperm.xlu0 %2205, %v269
      %v2207 = vpop.permute.xlu0 %2206
      %2209 = vset.pattern.permute.xlu0 15
      %2210 = vperm.xlu0 %2209, %v270
      %v2211 = vpop.permute.xlu0 %2210
      %2213 = vset.pattern.permute.xlu0 15
      %2214 = vperm.xlu0 %2213, %v271
      %v2215 = vpop.permute.xlu0 %2214
      %2217 = vset.pattern.permute.xlu0 15
      %2218 = vperm.xlu0 %2217, %v272
      %v2219 = vpop.permute.xlu0 %2218
      %2221 = vset.pattern.permute.xlu0 15
      %2222 = vperm.xlu0 %2221, %v273
      %v2223 = vpop.permute.xlu0 %2222
      %2225 = vset.pattern.permute.xlu0 15
      %2226 = vperm.xlu0 %2225, %v274
      %v2227 = vpop.permute.xlu0 %2226
      %2229 = vset.pattern.permute.xlu0 15
      %2230 = vperm.xlu0 %2229, %v275
      %v2231 = vpop.permute.xlu0 %2230
      %2233 = vset.pattern.permute.xlu0 15
      %2234 = vperm.xlu0 %2233, %v276
      %v2235 = vpop.permute.xlu0 %2234
      %2237 = vset.pattern.permute.xlu0 15
      %2238 = vperm.xlu0 %2237, %v277
      %v2239 = vpop.permute.xlu0 %2238
      %2241 = vset.pattern.permute.xlu0 15
      %2242 = vperm.xlu0 %2241, %v278
      %v2243 = vpop.permute.xlu0 %2242
      %2245 = vset.pattern.permute.xlu0 15
      %2246 = vperm.xlu0 %2245, %v279
      %v2247 = vpop.permute.xlu0 %2246
      %2249 = vset.pattern.permute.xlu0 15
      %2250 = vperm.xlu0 %2249, %v280
      %v2251 = vpop.permute.xlu0 %2250
      %2253 = vset.pattern.permute.xlu0 15
      %2254 = vperm.xlu0 %2253, %v281
      %v2255 = vpop.permute.xlu0 %2254
      %2257 = vset.pattern.permute.xlu0 15
      %2258 = vperm.xlu0 %2257, %v282
      %v2259 = vpop.permute.xlu0 %2258
      %2261 = vset.pattern.permute.xlu0 15
      %2262 = vperm.xlu0 %2261, %v283
      %v2263 = vpop.permute.xlu0 %2262
      %2265 = vset.pattern.permute.xlu0 15
      %2266 = vperm.xlu0 %2265, %v284
      %v2267 = vpop.permute.xlu0 %2266
      %v2269 = vlaneseq
      %v2270 = vshrl.u32 %v2269, 7
      %v2271 = vsub.s32 7, %v2270
      %v2272 = vrot.slane %v254, %v2271
      %v2273 = vlaneseq
      %v2274 = vshrl.u32 %v2273, 7
      %v2275 = vsub.s32 7, %v2274
      %v2276 = vrot.slane %v256, %v2275
      %v2277 = vlaneseq
      %v2278 = vshrl.u32 %v2277, 7
      %v2279 = vsub.s32 7, %v2278
      %v2280 = vrot.slane %v258, %v2279
      %v2281 = vlaneseq
      %v2282 = vshrl.u32 %v2281, 7
      %v2283 = vsub.s32 7, %v2282
      %v2284 = vrot.slane %v260, %v2283
      %v2285 = vlaneseq
      %v2286 = vshrl.u32 %v2285, 7
      %v2287 = vsub.s32 7, %v2286
      %v2288 = vrot.slane %v262, %v2287
      %v2289 = vlaneseq
      %v2290 = vshrl.u32 %v2289, 7
      %v2291 = vsub.s32 7, %v2290
      %v2292 = vrot.slane %v264, %v2291
      %v2293 = vlaneseq
      %v2294 = vshrl.u32 %v2293, 7
      %v2295 = vsub.s32 7, %v2294
      %v2296 = vrot.slane %v266, %v2295
      %v2297 = vlaneseq
      %v2298 = vshrl.u32 %v2297, 7
      %v2299 = vsub.s32 7, %v2298
      %v2300 = vrot.slane %v268, %v2299
      %v2301 = vmul.f32 %v2207, %v2272
      %v2302 = vmul.f32 %v2211, %v2272
      %v2303 = vmul.f32 %v2215, %v2276
      %v2304 = vmul.f32 %v2219, %v2276
      %v2305 = vmul.f32 %v2223, %v2280
      %v2306 = vmul.f32 %v2227, %v2280
      %v2307 = vmul.f32 %v2231, %v2284
      %v2308 = vmul.f32 %v2235, %v2284
      %v2309 = vmul.f32 %v2239, %v2288
      %v2310 = vmul.f32 %v2243, %v2288
      %v2311 = vmul.f32 %v2247, %v2292
      %v2312 = vmul.f32 %v2251, %v2292
      %v2313 = vmul.f32 %v2255, %v2296
      %v2314 = vmul.f32 %v2259, %v2296
      %v2315 = vmul.f32 %v2263, %v2300
      %v2316 = vmul.f32 %v2267, %v2300
      %v2317 = vadd.f32 %v2189, %v2301
      %v2318 = vadd.f32 %v2190, %v2302
      %v2319 = vadd.f32 %v2191, %v2303
      %v2320 = vadd.f32 %v2192, %v2304
      %v2321 = vadd.f32 %v2193, %v2305
      %v2322 = vadd.f32 %v2194, %v2306
      %v2323 = vadd.f32 %v2195, %v2307
      %v2324 = vadd.f32 %v2196, %v2308
      %v2325 = vadd.f32 %v2197, %v2309
      %v2326 = vadd.f32 %v2198, %v2310
      %v2327 = vadd.f32 %v2199, %v2311
      %v2328 = vadd.f32 %v2200, %v2312
      %v2329 = vadd.f32 %v2201, %v2313
      %v2330 = vadd.f32 %v2202, %v2314
      %v2331 = vadd.f32 %v2203, %v2315
      %v2332 = vadd.f32 %v2204, %v2316
      %v2333 = vld [vmem:[%s2] sm:$0xf]
      %v2334 = vld [vmem:[%s3] sm:$0xf]
      %vm2335 = vcmask 31744
      %v2337 = vsel %vm2335, %v253, 0
      %v2340 = vsel %vm2335, %v254, 0
      %v2343 = vsel %vm2335, %v255, 0
      %v2346 = vsel %vm2335, %v256, 0
      %v2349 = vsel %vm2335, %v257, 0
      %v2352 = vsel %vm2335, %v258, 0
      %v2355 = vsel %vm2335, %v259, 0
      %v2358 = vsel %vm2335, %v260, 0
      %v2361 = vsel %vm2335, %v261, 0
      %v2364 = vsel %vm2335, %v262, 0
      %v2367 = vsel %vm2335, %v263, 0
      %v2370 = vsel %vm2335, %v264, 0
      %v2373 = vsel %vm2335, %v265, 0
      %v2376 = vsel %vm2335, %v266, 0
      %v2379 = vsel %vm2335, %v267, 0
      %v2382 = vsel %vm2335, %v268, 0
      %vm2384 = vcmask 1043456
      %v2386 = vsel %vm2384, %v2334, 0
      %2388 = vmatprep.subr.mxu0 0.0
      %2389 = vmatpush1.msra.mxu0 0.0
      %2390 = vmatprep.subr.mxu0 0.0
      %2391 = vmatpush1.msra.mxu0 0.0
      %2392 = vmatprep.subr.mxu0 0.0
      %2393 = vmatpush1.msra.mxu0 0.0
      %2394 = vmatprep.subr.mxu0 0.0
      %2395 = vmatpush1.msra.mxu0 0.0
      %2396 = vmatprep.subr.mxu0 0.0
      %2397 = vmatpush1.msra.mxu0 0.0
      %2398 = vmatprep.subr.mxu0 0.0
      %2399 = vmatpush1.msra.mxu0 0.0
      %2400 = vmatprep.subr.mxu0 0.0
      %2401 = vmatpush1.msra.mxu0 0.0
      %2402 = vmatprep.subr.mxu0 0.0
      %2403 = vmatpush1.msra.mxu0 0.0
      %2404 = vmatprep.subr.mxu0 0.0
      %2405 = vmatpush1.msra.mxu0 0.0
      %2406 = vmatprep.subr.mxu0 0.0
      %2407 = vmatpush1.msra.mxu0 0.0
      %2408 = vmatprep.subr.mxu0 0.0
      %2409 = vmatpush1.msra.mxu0 0.0
      %2410 = vmatprep.subr.mxu0 0.0
      %2411 = vmatpush1.msra.mxu0 0.0
      %2412 = vmatprep.subr.mxu0 0.0
      %2413 = vmatpush1.msra.mxu0 0.0
      %2414 = vmatprep.subr.mxu0 0.0
      %2415 = vmatpush1.msra.mxu0 0.0
      %2416 = vmatprep.subr.mxu0 0.0
      %2417 = vmatpush1.msra.mxu0 0.0
      %2418 = vmatprep.subr.mxu0 0.0
      %2419 = vmatpush1.msra.mxu0 %v2386
      %2420 = vmatprep.subr.mxu0 0.0
      %2421 = vmatpush2.msra.mxu0 0.0
      %2422 = vmatprep.subr.mxu0 0.0
      %2423 = vmatpush2.msra.mxu0 0.0
      %2424 = vmatprep.subr.mxu0 0.0
      %2425 = vmatpush2.msra.mxu0 0.0
      %2426 = vmatprep.subr.mxu0 0.0
      %2427 = vmatpush2.msra.mxu0 0.0
      %2428 = vmatprep.subr.mxu0 0.0
      %2429 = vmatpush2.msra.mxu0 0.0
      %2430 = vmatprep.subr.mxu0 0.0
      %2431 = vmatpush2.msra.mxu0 0.0
      %2432 = vmatprep.subr.mxu0 0.0
      %2433 = vmatpush2.msra.mxu0 0.0
      %2434 = vmatprep.subr.mxu0 0.0
      %2435 = vmatpush2.msra.mxu0 0.0
      %2436 = vmatprep.subr.mxu0 0.0
      %2437 = vmatpush2.msra.mxu0 0.0
      %2438 = vmatprep.subr.mxu0 0.0
      %2439 = vmatpush2.msra.mxu0 0.0
      %2440 = vmatprep.subr.mxu0 0.0
      %2441 = vmatpush2.msra.mxu0 0.0
      %2442 = vmatprep.subr.mxu0 0.0
      %2443 = vmatpush2.msra.mxu0 0.0
      %2444 = vmatprep.subr.mxu0 0.0
      %2445 = vmatpush2.msra.mxu0 0.0
      %2446 = vmatprep.subr.mxu0 0.0
      %2447 = vmatpush2.msra.mxu0 0.0
      %2448 = vmatprep.subr.mxu0 0.0
      %2449 = vmatpush2.msra.mxu0 0.0
      %2450 = vmatprep.subr.mxu0 0.0
      %2451 = vmatpush2.msra.mxu0 0.0
      %2452 = vmatprep.mubr.f32.mxu0 0.0
      %2453 = vmatmul.mubr.f32.gmra.mxu0 %v2337
      %v2454 = vpop.f32.mrf.mxu0
      %v2455 = vadd.f32 0.0, %v2454
      %v2456 = vpop.f32.mrf.mxu0
      %2457 = vmatprep.mubr.f32.mxu0 0.0
      %2458 = vmatmul.mubr.f32.gmra.mxu0 %v2340
      %v2459 = vpop.f32.mrf.mxu0
      %v2460 = vadd.f32 0.0, %v2459
      %v2461 = vpop.f32.mrf.mxu0
      %2462 = vmatprep.mubr.f32.mxu0 0.0
      %2463 = vmatmul.mubr.f32.gmra.mxu0 %v2343
      %v2464 = vpop.f32.mrf.mxu0
      %v2465 = vadd.f32 0.0, %v2464
      %v2466 = vpop.f32.mrf.mxu0
      %2467 = vmatprep.mubr.f32.mxu0 0.0
      %2468 = vmatmul.mubr.f32.gmra.mxu0 %v2346
      %v2469 = vpop.f32.mrf.mxu0
      %v2470 = vadd.f32 0.0, %v2469
      %v2471 = vpop.f32.mrf.mxu0
      %2472 = vmatprep.mubr.f32.mxu0 0.0
      %2473 = vmatmul.mubr.f32.gmra.mxu0 %v2349
      %v2474 = vpop.f32.mrf.mxu0
      %v2475 = vadd.f32 0.0, %v2474
      %v2476 = vpop.f32.mrf.mxu0
      %2477 = vmatprep.mubr.f32.mxu0 0.0
      %2478 = vmatmul.mubr.f32.gmra.mxu0 %v2352
      %v2479 = vpop.f32.mrf.mxu0
      %v2480 = vadd.f32 0.0, %v2479
      %v2481 = vpop.f32.mrf.mxu0
      %2482 = vmatprep.mubr.f32.mxu0 0.0
      %2483 = vmatmul.mubr.f32.gmra.mxu0 %v2355
      %v2484 = vpop.f32.mrf.mxu0
      %v2485 = vadd.f32 0.0, %v2484
      %v2486 = vpop.f32.mrf.mxu0
      %2487 = vmatprep.mubr.f32.mxu0 0.0
      %2488 = vmatmul.mubr.f32.gmra.mxu0 %v2358
      %v2489 = vpop.f32.mrf.mxu0
      %v2490 = vadd.f32 0.0, %v2489
      %v2491 = vpop.f32.mrf.mxu0
      %2492 = vmatprep.mubr.f32.mxu0 0.0
      %2493 = vmatmul.mubr.f32.gmra.mxu0 %v2361
      %v2494 = vpop.f32.mrf.mxu0
      %v2495 = vadd.f32 0.0, %v2494
      %v2496 = vpop.f32.mrf.mxu0
      %2497 = vmatprep.mubr.f32.mxu0 0.0
      %2498 = vmatmul.mubr.f32.gmra.mxu0 %v2364
      %v2499 = vpop.f32.mrf.mxu0
      %v2500 = vadd.f32 0.0, %v2499
      %v2501 = vpop.f32.mrf.mxu0
      %2502 = vmatprep.mubr.f32.mxu0 0.0
      %2503 = vmatmul.mubr.f32.gmra.mxu0 %v2367
      %v2504 = vpop.f32.mrf.mxu0
      %v2505 = vadd.f32 0.0, %v2504
      %v2506 = vpop.f32.mrf.mxu0
      %2507 = vmatprep.mubr.f32.mxu0 0.0
      %2508 = vmatmul.mubr.f32.gmra.mxu0 %v2370
      %v2509 = vpop.f32.mrf.mxu0
      %v2510 = vadd.f32 0.0, %v2509
      %v2511 = vpop.f32.mrf.mxu0
      %2512 = vmatprep.mubr.f32.mxu0 0.0
      %2513 = vmatmul.mubr.f32.gmra.mxu0 %v2373
      %v2514 = vpop.f32.mrf.mxu0
      %v2515 = vadd.f32 0.0, %v2514
      %v2516 = vpop.f32.mrf.mxu0
      %2517 = vmatprep.mubr.f32.mxu0 0.0
      %2518 = vmatmul.mubr.f32.gmra.mxu0 %v2376
      %v2519 = vpop.f32.mrf.mxu0
      %v2520 = vadd.f32 0.0, %v2519
      %v2521 = vpop.f32.mrf.mxu0
      %2522 = vmatprep.mubr.f32.mxu0 0.0
      %2523 = vmatmul.mubr.f32.gmra.mxu0 %v2379
      %v2524 = vpop.f32.mrf.mxu0
      %v2525 = vadd.f32 0.0, %v2524
      %v2526 = vpop.f32.mrf.mxu0
      %2527 = vmatprep.mubr.f32.mxu0 0.0
      %2528 = vmatmul.mubr.f32.gmra.mxu0 %v2382
      %v2529 = vpop.f32.mrf.mxu0
      %v2530 = vadd.f32 0.0, %v2529
      %v2531 = vpop.f32.mrf.mxu0
      %2532 = vdwg.mxu0
      %v2534 = vsel %vm2335, %v2317, 0
      %v2537 = vsel %vm2335, %v2318, 0
      %v2540 = vsel %vm2335, %v2319, 0
      %v2543 = vsel %vm2335, %v2320, 0
      %v2546 = vsel %vm2335, %v2321, 0
      %v2549 = vsel %vm2335, %v2322, 0
      %v2552 = vsel %vm2335, %v2323, 0
      %v2555 = vsel %vm2335, %v2324, 0
      %v2558 = vsel %vm2335, %v2325, 0
      %v2561 = vsel %vm2335, %v2326, 0
      %v2564 = vsel %vm2335, %v2327, 0
      %v2567 = vsel %vm2335, %v2328, 0
      %v2570 = vsel %vm2335, %v2329, 0
      %v2573 = vsel %vm2335, %v2330, 0
      %v2576 = vsel %vm2335, %v2331, 0
      %v2579 = vsel %vm2335, %v2332, 0
      %v2582 = vsel %vm2384, %v2333, 0
      %2584 = vmatprep.subr.mxu0 0.0
      %2585 = vmatpush1.msra.mxu0 0.0
      %2586 = vmatprep.subr.mxu0 0.0
      %2587 = vmatpush1.msra.mxu0 0.0
      %2588 = vmatprep.subr.mxu0 0.0
      %2589 = vmatpush1.msra.mxu0 0.0
      %2590 = vmatprep.subr.mxu0 0.0
      %2591 = vmatpush1.msra.mxu0 0.0
      %2592 = vmatprep.subr.mxu0 0.0
      %2593 = vmatpush1.msra.mxu0 0.0
      %2594 = vmatprep.subr.mxu0 0.0
      %2595 = vmatpush1.msra.mxu0 0.0
      %2596 = vmatprep.subr.mxu0 0.0
      %2597 = vmatpush1.msra.mxu0 0.0
      %2598 = vmatprep.subr.mxu0 0.0
      %2599 = vmatpush1.msra.mxu0 0.0
      %2600 = vmatprep.subr.mxu0 0.0
      %2601 = vmatpush1.msra.mxu0 0.0
      %2602 = vmatprep.subr.mxu0 0.0
      %2603 = vmatpush1.msra.mxu0 0.0
      %2604 = vmatprep.subr.mxu0 0.0
      %2605 = vmatpush1.msra.mxu0 0.0
      %2606 = vmatprep.subr.mxu0 0.0
      %2607 = vmatpush1.msra.mxu0 0.0
      %2608 = vmatprep.subr.mxu0 0.0
      %2609 = vmatpush1.msra.mxu0 0.0
      %2610 = vmatprep.subr.mxu0 0.0
      %2611 = vmatpush1.msra.mxu0 0.0
      %2612 = vmatprep.subr.mxu0 0.0
      %2613 = vmatpush1.msra.mxu0 0.0
      %2614 = vmatprep.subr.mxu0 0.0
      %2615 = vmatpush1.msra.mxu0 %v2582
      %2616 = vmatprep.subr.mxu0 0.0
      %2617 = vmatpush2.msra.mxu0 0.0
      %2618 = vmatprep.subr.mxu0 0.0
      %2619 = vmatpush2.msra.mxu0 0.0
      %2620 = vmatprep.subr.mxu0 0.0
      %2621 = vmatpush2.msra.mxu0 0.0
      %2622 = vmatprep.subr.mxu0 0.0
      %2623 = vmatpush2.msra.mxu0 0.0
      %2624 = vmatprep.subr.mxu0 0.0
      %2625 = vmatpush2.msra.mxu0 0.0
      %2626 = vmatprep.subr.mxu0 0.0
      %2627 = vmatpush2.msra.mxu0 0.0
      %2628 = vmatprep.subr.mxu0 0.0
      %2629 = vmatpush2.msra.mxu0 0.0
      %2630 = vmatprep.subr.mxu0 0.0
      %2631 = vmatpush2.msra.mxu0 0.0
      %2632 = vmatprep.subr.mxu0 0.0
      %2633 = vmatpush2.msra.mxu0 0.0
      %2634 = vmatprep.subr.mxu0 0.0
      %2635 = vmatpush2.msra.mxu0 0.0
      %2636 = vmatprep.subr.mxu0 0.0
      %2637 = vmatpush2.msra.mxu0 0.0
      %2638 = vmatprep.subr.mxu0 0.0
      %2639 = vmatpush2.msra.mxu0 0.0
      %2640 = vmatprep.subr.mxu0 0.0
      %2641 = vmatpush2.msra.mxu0 0.0
      %2642 = vmatprep.subr.mxu0 0.0
      %2643 = vmatpush2.msra.mxu0 0.0
      %2644 = vmatprep.subr.mxu0 0.0
      %2645 = vmatpush2.msra.mxu0 0.0
      %2646 = vmatprep.subr.mxu0 0.0
      %2647 = vmatpush2.msra.mxu0 0.0
      %2648 = vmatprep.mubr.f32.mxu0 0.0
      %2649 = vmatmul.mubr.f32.gmra.mxu0 %v2534
      %v2650 = vpop.f32.mrf.mxu0
      %v2651 = vadd.f32 %v2455, %v2650
      %v2652 = vpop.f32.mrf.mxu0
      %2653 = vmatprep.mubr.f32.mxu0 0.0
      %2654 = vmatmul.mubr.f32.gmra.mxu0 %v2537
      %v2655 = vpop.f32.mrf.mxu0
      %v2656 = vadd.f32 %v2460, %v2655
      %v2657 = vpop.f32.mrf.mxu0
      %2658 = vmatprep.mubr.f32.mxu0 0.0
      %2659 = vmatmul.mubr.f32.gmra.mxu0 %v2540
      %v2660 = vpop.f32.mrf.mxu0
      %v2661 = vadd.f32 %v2465, %v2660
      %v2662 = vpop.f32.mrf.mxu0
      %2663 = vmatprep.mubr.f32.mxu0 0.0
      %2664 = vmatmul.mubr.f32.gmra.mxu0 %v2543
      %v2665 = vpop.f32.mrf.mxu0
      %v2666 = vadd.f32 %v2470, %v2665
      %v2667 = vpop.f32.mrf.mxu0
      %2668 = vmatprep.mubr.f32.mxu0 0.0
      %2669 = vmatmul.mubr.f32.gmra.mxu0 %v2546
      %v2670 = vpop.f32.mrf.mxu0
      %v2671 = vadd.f32 %v2475, %v2670
      %v2672 = vpop.f32.mrf.mxu0
      %2673 = vmatprep.mubr.f32.mxu0 0.0
      %2674 = vmatmul.mubr.f32.gmra.mxu0 %v2549
      %v2675 = vpop.f32.mrf.mxu0
      %v2676 = vadd.f32 %v2480, %v2675
      %v2677 = vpop.f32.mrf.mxu0
      %2678 = vmatprep.mubr.f32.mxu0 0.0
      %2679 = vmatmul.mubr.f32.gmra.mxu0 %v2552
      %v2680 = vpop.f32.mrf.mxu0
      %v2681 = vadd.f32 %v2485, %v2680
      %v2682 = vpop.f32.mrf.mxu0
      %2683 = vmatprep.mubr.f32.mxu0 0.0
      %2684 = vmatmul.mubr.f32.gmra.mxu0 %v2555
      %v2685 = vpop.f32.mrf.mxu0
      %v2686 = vadd.f32 %v2490, %v2685
      %v2687 = vpop.f32.mrf.mxu0
      %2688 = vmatprep.mubr.f32.mxu0 0.0
      %2689 = vmatmul.mubr.f32.gmra.mxu0 %v2558
      %v2690 = vpop.f32.mrf.mxu0
      %v2691 = vadd.f32 %v2495, %v2690
      %v2692 = vpop.f32.mrf.mxu0
      %2693 = vmatprep.mubr.f32.mxu0 0.0
      %2694 = vmatmul.mubr.f32.gmra.mxu0 %v2561
      %v2695 = vpop.f32.mrf.mxu0
      %v2696 = vadd.f32 %v2500, %v2695
      %v2697 = vpop.f32.mrf.mxu0
      %2698 = vmatprep.mubr.f32.mxu0 0.0
      %2699 = vmatmul.mubr.f32.gmra.mxu0 %v2564
      %v2700 = vpop.f32.mrf.mxu0
      %v2701 = vadd.f32 %v2505, %v2700
      %v2702 = vpop.f32.mrf.mxu0
      %2703 = vmatprep.mubr.f32.mxu0 0.0
      %2704 = vmatmul.mubr.f32.gmra.mxu0 %v2567
      %v2705 = vpop.f32.mrf.mxu0
      %v2706 = vadd.f32 %v2510, %v2705
      %v2707 = vpop.f32.mrf.mxu0
      %2708 = vmatprep.mubr.f32.mxu0 0.0
      %2709 = vmatmul.mubr.f32.gmra.mxu0 %v2570
      %v2710 = vpop.f32.mrf.mxu0
      %v2711 = vadd.f32 %v2515, %v2710
      %v2712 = vpop.f32.mrf.mxu0
      %2713 = vmatprep.mubr.f32.mxu0 0.0
      %2714 = vmatmul.mubr.f32.gmra.mxu0 %v2573
      %v2715 = vpop.f32.mrf.mxu0
      %v2716 = vadd.f32 %v2520, %v2715
      %v2717 = vpop.f32.mrf.mxu0
      %2718 = vmatprep.mubr.f32.mxu0 0.0
      %2719 = vmatmul.mubr.f32.gmra.mxu0 %v2576
      %v2720 = vpop.f32.mrf.mxu0
      %v2721 = vadd.f32 %v2525, %v2720
      %v2722 = vpop.f32.mrf.mxu0
      %2723 = vmatprep.mubr.f32.mxu0 0.0
      %2724 = vmatmul.mubr.f32.gmra.mxu0 %v2579
      %v2725 = vpop.f32.mrf.mxu0
      %v2726 = vadd.f32 %v2530, %v2725
      %v2727 = vpop.f32.mrf.mxu0
      %2728 = vdwg.mxu0
      %v2729 = vld [vmem:[%s4] sm:$0x1]
      %v2731 = vlaneseq
      %v2732 = vshrl.u32 %v2731, 7
      %v2733 = vsub.s32 0, %v2732
      %v2734 = vrot.slane %v2729, %v2733
      %v2736 = vadd.f32 %v2651, %v2734
      %v2737 = vadd.f32 %v2656, %v2734
      %v2738 = vadd.f32 %v2661, %v2734
      %v2739 = vadd.f32 %v2666, %v2734
      %v2740 = vadd.f32 %v2671, %v2734
      %v2741 = vadd.f32 %v2676, %v2734
      %v2742 = vadd.f32 %v2681, %v2734
      %v2743 = vadd.f32 %v2686, %v2734
      %v2744 = vadd.f32 %v2691, %v2734
      %v2745 = vadd.f32 %v2696, %v2734
      %v2746 = vadd.f32 %v2701, %v2734
      %v2747 = vadd.f32 %v2706, %v2734
      %v2748 = vadd.f32 %v2711, %v2734
      %v2749 = vadd.f32 %v2716, %v2734
      %v2750 = vadd.f32 %v2721, %v2734
      %v2751 = vadd.f32 %v2726, %v2734
      %v2752 = vmax.f32 %v2736, 0.0
      %v2753 = vmax.f32 %v2737, 0.0
      %v2754 = vmax.f32 %v2738, 0.0
      %v2755 = vmax.f32 %v2739, 0.0
      %v2756 = vmax.f32 %v2740, 0.0
      %v2757 = vmax.f32 %v2741, 0.0
      %v2758 = vmax.f32 %v2742, 0.0
      %v2759 = vmax.f32 %v2743, 0.0
      %v2760 = vmax.f32 %v2744, 0.0
      %v2761 = vmax.f32 %v2745, 0.0
      %v2762 = vmax.f32 %v2746, 0.0
      %v2763 = vmax.f32 %v2747, 0.0
      %v2764 = vmax.f32 %v2748, 0.0
      %v2765 = vmax.f32 %v2749, 0.0
      %v2766 = vmax.f32 %v2750, 0.0
      %v2767 = vmax.f32 %v2751, 0.0
      %vm2768 = vcmask 64512
      %2769 = vst.msk [vmem:[%s251] sm:$0xff] %vm2768, %v2752
      %2770 = vst.msk [vmem:[%s251 + $0x8] sm:$0xff] %vm2768, %v2753
      %2771 = vst.msk [vmem:[%s251 + $0x10] sm:$0xff] %vm2768, %v2754
      %2772 = vst.msk [vmem:[%s251 + $0x18] sm:$0xff] %vm2768, %v2755
      %2773 = vst.msk [vmem:[%s251 + $0x20] sm:$0xff] %vm2768, %v2756
      %2774 = vst.msk [vmem:[%s251 + $0x28] sm:$0xff] %vm2768, %v2757
      %2775 = vst.msk [vmem:[%s251 + $0x30] sm:$0xff] %vm2768, %v2758
      %2776 = vst.msk [vmem:[%s251 + $0x38] sm:$0xff] %vm2768, %v2759
      %2777 = vst.msk [vmem:[%s251 + $0x40] sm:$0xff] %vm2768, %v2760
      %2778 = vst.msk [vmem:[%s251 + $0x48] sm:$0xff] %vm2768, %v2761
      %2779 = vst.msk [vmem:[%s251 + $0x50] sm:$0xff] %vm2768, %v2762
      %2780 = vst.msk [vmem:[%s251 + $0x58] sm:$0xff] %vm2768, %v2763
      %2781 = vst.msk [vmem:[%s251 + $0x60] sm:$0xff] %vm2768, %v2764
      %2782 = vst.msk [vmem:[%s251 + $0x68] sm:$0xff] %vm2768, %v2765
      %2783 = vst.msk [vmem:[%s251 + $0x70] sm:$0xff] %vm2768, %v2766
      %2784 = vst.msk [vmem:[%s251 + $0x78] sm:$0xff] %vm2768, %v2767
      %s2785 = smul.u32 16, %s16
      %p2786 = scmp.lt.s32.totalorder %s2785, 31
      %s2787 = scalar_select %p2786, %s2785, 31
      %s2788 = smul.addr %s2787, 8
      %s2789 = scalar_lea.vmem %s5, %s2788
      // Predicated region
      $region41: #{tpu_custom_call.1} parent=39 // pred_check
        %p2790 = pneg %p149
      $region42: #{tpu_custom_call.1} parent=39 // pred_check_branch
        %2792 = sbr.rel (%p2790) target = $region44
      $region43: #{tpu_custom_call.1} parent=39 // pred_region
        %s2793 = smul.u32 16, %s16
      $region44: #{tpu_custom_call.1} parent=39 // pred_fallthru
        _
    $region40: #{tpu_custom_call.1} parent=5 // pred_fallthru
      _
    %p2794 = scmp.le.s32.totalorder 2, %s11
    // Predicated region
    $region45: #{tpu_custom_call.1} parent=5 // pred_check
      %p2795 = pneg %p2794
    $region46: #{tpu_custom_call.1} parent=5 // pred_check_branch
      %2797 = sbr.rel (%p2795) target = $region48
    $region47: #{tpu_custom_call.1} parent=5 // pred_region
      %s2798 = ssub.s32 %s11, 2
      // Predicated region
      $region49: #{tpu_custom_call.1} parent=47 // pred_check
        %p2799 = pneg %p155
      $region50: #{tpu_custom_call.1} parent=47 // pred_check_branch
        %2801 = sbr.rel (%p2799) target = $region52
      $region51: #{tpu_custom_call.1} parent=47 // pred_region
        %s2802 = smul.u32 16, %s17
        %p2803 = scmp.lt.s32.totalorder %s2802, 31
        %s2804 = scalar_select %p2803, %s2802, 31
        %s2805 = smul.addr %s2804, 8
        %s2806 = scalar_lea.vmem %s5, %s2805
      $region52: #{tpu_custom_call.1} parent=47 // pred_fallthru
        _
    $region48: #{tpu_custom_call.1} parent=5 // pred_fallthru
      _
  $region6: #{tpu_custom_call.1} parent=0 // loop_footer
    %s15 = sadd.s32 1, %s11
  $region7: #{tpu_custom_call.1} parent=0 // loop_footer_branch
    %10 = sbr.rel target = $region3
  $region8: #{tpu_custom_call.1} parent=0 // loop_exit
    _

</llo_original>
